<compile_context>
chip_gen: v7x
topology: tpu7x:2x2x1
jax: 0.10.0
libtpu: 0.0.40
codegen_flags: <defaults>
</compile_context>

<pallas_src>
import jax
import jax.numpy as jnp
from jax.experimental import pallas as pl
from jax.experimental.pallas import tpu as pltpu


# ---------------------------------------------------------------------------
# Fused kernel: both LSTM heads + both linear heads, whole sequence, one call.
# ---------------------------------------------------------------------------
def _fused_lstm_heads_kernel(x_ref, wih_ref, whh_ref, b_ref, wout_ref, bout_ref,
                             h0_ref, c0_ref,
                             out_ref, hN_ref, cN_ref,
                             hhist_sc):
    """
    x_ref    : (B, T, I)   batch-major observations (RLlib add_time_dimension layout)
    wih_ref  : (I, 8H)     gate-interleaved W_ih^T, cols [i_pi,i_v,f_pi,f_v,g_pi,g_v,o_pi,o_v]
    whh_ref  : (2H, 8H)    per-gate block-diagonal W_hh^T acting on h_cat = [h_pi | h_v]
    b_ref    : (1, 8H)     b_ih + b_hh, same interleaving
    wout_ref : (2H, O+1)   block-diagonal output head [[W_pi^T, 0], [0, W_v^T]]
    bout_ref : (1, O+1)
    h0/c0    : (B, 2H)     concatenated initial state [pi | v]
    out_ref  : (B*T, O+1)  logits (cols :O) + value (col O), rows ordered b*T + t
    hN/cN    : (B, 2H)     final state (aliased onto h0/c0 HBM buffers)
    hhist_sc : (B, T, 2H)  f32 VMEM scratch: hidden state of every timestep
    """
    B, T, _ = x_ref.shape
    H2 = h0_ref.shape[-1]                       # 2*H (both heads)

    wih = wih_ref[...]
    whh = whh_ref[...]
    bias = b_ref[...]
    h = h0_ref[...].astype(jnp.float32)
    c = c0_ref[...].astype(jnp.float32)

    # Fully unrolled recurrence: static slices only, h/c live in vregs, the LLO
    # scheduler sees the whole dependence chain (no grid-step pipeline overhead).
    for t in range(T):
        x_t = x_ref[:, t, :]                                            # (B, I)
        gates = (jnp.dot(x_t, wih, preferred_element_type=jnp.float32)
                 + jnp.dot(h, whh, preferred_element_type=jnp.float32)
                 + bias)                                                # (B, 8H)
        # PyTorch gate order i, f, g, o; each width-2H slice covers [pi | v] and is
        # directly aligned with the h_cat / c_cat column layout.
        i_g = jax.nn.sigmoid(gates[:, 0 * H2:1 * H2])
        f_g = jax.nn.sigmoid(gates[:, 1 * H2:2 * H2])
        g_g = jnp.tanh(gates[:, 2 * H2:3 * H2])
        o_g = jax.nn.sigmoid(gates[:, 3 * H2:4 * H2])
        c = f_g * c + i_g * g_g
        h = o_g * jnp.tanh(c)
        hhist_sc[:, t, :] = h

    hN_ref[...] = h.astype(hN_ref.dtype)
    cN_ref[...] = c.astype(cN_ref.dtype)

    # One fused output-head matmul over all timesteps of both heads:
    # (B*T, 2H) @ (2H, O+1)  -> single store (instead of T masked 4/1-lane stores).
    h_all = hhist_sc[...].reshape(B * T, H2)
    out_ref[...] = (jnp.dot(h_all, wout_ref[...], preferred_element_type=jnp.float32)
                    + bout_ref[...]).astype(out_ref.dtype)


def fused_lstm_heads(x_bti, wih, whh, bias, wout, bout, h0, c0):
    """Single-invocation pallas_call over the whole sequence for both heads."""
    B, T, _ = x_bti.shape
    H2 = h0.shape[-1]
    Oc = wout.shape[-1]
    N = B * T

    def vmem():
        return pl.BlockSpec(memory_space=pltpu.MemorySpace.VMEM)

    return pl.pallas_call(
        _fused_lstm_heads_kernel,
        out_shape=(
            jax.ShapeDtypeStruct((N, Oc), jnp.float32),    # [logits | value]
            jax.ShapeDtypeStruct((B, H2), jnp.float32),    # h_N (pi | v)
            jax.ShapeDtypeStruct((B, H2), jnp.float32),    # c_N (pi | v)
        ),
        in_specs=[vmem() for _ in range(8)],
        out_specs=(vmem(), vmem(), vmem()),
        scratch_shapes=[pltpu.VMEM((B, T, H2), jnp.float32)],
        input_output_aliases={6: 1, 7: 2},                 # h0 -> h_N, c0 -> c_N
    )(x_bti, wih, whh, bias, wout, bout, h0, c0)


# ---------------------------------------------------------------------------
# Parameter construction / packing (PyTorch layouts -> fused kernel layouts).
# ---------------------------------------------------------------------------
def init_lstm_head_params_raw(key, num_inp, hidden, num_out):
    """PyTorch-layout synthetic init: uniform(-1/sqrt(H), 1/sqrt(H))."""
    ks = jax.random.split(key, 6)
    bound = 1.0 / (hidden ** 0.5)
    u = lambda k, s: jax.random.uniform(k, s, jnp.float32, -bound, bound)
    return {
        "w_ih": u(ks[0], (4 * hidden, num_inp)),   # weight_ih_l0
        "w_hh": u(ks[1], (4 * hidden, hidden)),    # weight_hh_l0
        "b_ih": u(ks[2], (4 * hidden,)),
        "b_hh": u(ks[3], (4 * hidden,)),
        "w_out": u(ks[4], (num_out, hidden)),      # nn.Linear(hidden, num_out)
        "b_out": u(ks[5], (num_out,)),
    }


def pack_fcnet_params(p_pi, p_v, hidden):
    """Pack the two heads' PyTorch-layout params into the fused kernel layout."""
    H = hidden

    def gate_interleave(wp, wv):                    # (4H, X), (4H, X) -> (X, 8H)
        X = wp.shape[1]
        w = jnp.concatenate([wp.reshape(4, H, X), wv.reshape(4, H, X)], axis=1)
        return w.reshape(8 * H, X).T                # cols [i_pi,i_v,f_pi,f_v,g_pi,g_v,o_pi,o_v]

    wih = gate_interleave(p_pi["w_ih"], p_v["w_ih"])            # (I, 8H)

    zero_hh = jnp.zeros((H, H), jnp.float32)
    blocks = []
    for g in range(4):                                          # block-diag per gate
        a = p_pi["w_hh"][g * H:(g + 1) * H, :].T                # (H, H): h_pi -> gate g
        b = p_v["w_hh"][g * H:(g + 1) * H, :].T                 # (H, H): h_v  -> gate g
        blocks.append(jnp.concatenate(
            [jnp.concatenate([a, zero_hh], axis=1),
             jnp.concatenate([zero_hh, b], axis=1)], axis=0))   # (2H, 2H)
    whh = jnp.concatenate(blocks, axis=1)                       # (2H, 8H)

    bp = (p_pi["b_ih"] + p_pi["b_hh"]).reshape(4, H)
    bv = (p_v["b_ih"] + p_v["b_hh"]).reshape(4, H)
    bias = jnp.concatenate([bp, bv], axis=1).reshape(1, 8 * H)  # (1, 8H)

    O = p_pi["w_out"].shape[0]
    wout = jnp.concatenate(
        [jnp.concatenate([p_pi["w_out"].T, jnp.zeros((H, 1), jnp.float32)], axis=1),
         jnp.concatenate([jnp.zeros((H, O), jnp.float32), p_v["w_out"].T], axis=1)],
        axis=0)                                                 # (2H, O+1)
    bout = jnp.concatenate([p_pi["b_out"], p_v["b_out"]]).reshape(1, O + 1)

    return {"wih": wih, "whh": whh, "bias": bias, "wout": wout, "bout": bout}


# ---------------------------------------------------------------------------
# FCNet.forward wrapper.
# ---------------------------------------------------------------------------
def fcnet_forward(obs, state, seq_lens, params):
    """obs: (N, num_inp) with N = B*T; state = [h_pi, c_pi, h_v, c_v], each (B, H)."""
    B = seq_lens.shape[0]
    N = obs.shape[0]
    assert N % B == 0, "batch must be an exact multiple of the number of sequences"
    T = N // B

    # add_time_dimension (batch-major, time_major=False): free reshape, no transpose.
    x_bti = obs.astype(jnp.float32).reshape(B, T, -1)

    h_pi, c_pi, h_v, c_v = state
    h0 = jnp.concatenate([h_pi, h_v], axis=1)        # (B, 2H)
    c0 = jnp.concatenate([c_pi, c_v], axis=1)

    out, hN, cN = fused_lstm_heads(
        x_bti, params["wih"], params["whh"], params["bias"],
        params["wout"], params["bout"], h0, c0)

    O = params["bout"].shape[-1] - 1                 # num_outputs (value col is last)
    H = h_pi.shape[-1]
    logits = out[:, :O]                              # (N, num_outputs), rows b*T + t
    values = out[:, O]                               # (N,)  == v_layer(...).squeeze(1)
    state_out = [hN[:, :H], cN[:, :H], hN[:, H:], cN[:, H:]]
    # NOTE: seq_lens is not used for masking, matching nn.LSTM over the padded batch
    # (RLlib masks padded steps in the loss, not in the model).
    return logits, state_out, values


# ---------------------------------------------------------------------------
# Pure-JAX reference (mirrors the PyTorch module) for a numerical sanity check.
# ---------------------------------------------------------------------------
def fcnet_forward_ref(obs, state, seq_lens, p_pi, p_v):
    B = seq_lens.shape[0]
    N = obs.shape[0]
    T = N // B
    x = obs.astype(jnp.float32).reshape(B, T, -1)

    def head(p, h0, c0):
        H = h0.shape[-1]
        w_ih, w_hh = p["w_ih"], p["w_hh"]
        b = p["b_ih"] + p["b_hh"]

        def step(carry, x_t):
            h, c = carry
            gates = x_t @ w_ih.T + h @ w_hh.T + b
            i = jax.nn.sigmoid(gates[:, 0:H])
            f = jax.nn.sigmoid(gates[:, H:2 * H])
            g = jnp.tanh(gates[:, 2 * H:3 * H])
            o = jax.nn.sigmoid(gates[:, 3 * H:4 * H])
            c = f * c + i * g
            h = o * jnp.tanh(c)
            return (h, c), h

        (hN, cN), hs = jax.lax.scan(step, (h0, c0), jnp.swapaxes(x, 0, 1))
        emb = jnp.swapaxes(hs, 0, 1).reshape(N, H)   # emb.view(batch_size, -1)
        out = emb @ p["w_out"].T + p["b_out"]
        return out, hN, cN

    h_pi, c_pi, h_v, c_v = state
    logits, hpN, cpN = head(p_pi, h_pi, c_pi)
    vals, hvN, cvN = head(p_v, h_v, c_v)
    return logits, [hpN, cpN, hvN, cvN], vals[:, 0]


if __name__ == "__main__":
    # Small shapes: B=2 sequences, T=8 steps, obs dim 16, hidden 32, 4 actions.
    B, T, NUM_INP, HIDDEN, NUM_OUTPUTS = 2, 8, 16, 32, 4
    N = B * T

    key = jax.random.PRNGKey(0)
    k_obs, k_pi, k_v = jax.random.split(key, 3)

    obs = jax.random.normal(k_obs, (N, NUM_INP), jnp.float32)
    seq_lens = jnp.full((B,), T, jnp.int32)
    # get_initial_state(): zeros (lstm_size,) per sample -> batched (B, H).
    state = [jnp.zeros((B, HIDDEN), jnp.float32) for _ in range(4)]

    raw_pi = init_lstm_head_params_raw(k_pi, NUM_INP, HIDDEN, NUM_OUTPUTS)
    raw_v = init_lstm_head_params_raw(k_v, NUM_INP, HIDDEN, 1)
    params = pack_fcnet_params(raw_pi, raw_v, HIDDEN)

    fwd = jax.jit(fcnet_forward)
    logits, state_out, values = fwd(obs, state, seq_lens, params)
    jax.block_until_ready((logits, state_out, values))

    assert logits.shape == (N, NUM_OUTPUTS)
    assert values.shape == (N,)
    assert all(s.shape == (B, HIDDEN) for s in state_out)

    # Numerical sanity check against the pure-JAX reference of the PyTorch module.
    l_ref, s_ref, v_ref = fcnet_forward_ref(obs, state, seq_lens, raw_pi, raw_v)
    tol = 1e-2
    assert float(jnp.max(jnp.abs(logits - l_ref))) <= tol
    assert float(jnp.max(jnp.abs(values - v_ref))) <= tol
    for a, b in zip(state_out, s_ref):
        assert float(jnp.max(jnp.abs(a - b))) <= tol

    print("KERNEL_OK")
</pallas_src>

<mosaic_0001>
module attributes {stable_mosaic.version = 11 : i64} {
  func.func @_fused_lstm_heads_kernel(%arg0: memref<2x8x16xf32, #tpu.memory_space<vmem>>, %arg1: memref<16x256xf32, #tpu.memory_space<vmem>>, %arg2: memref<64x256xf32, #tpu.memory_space<vmem>>, %arg3: memref<1x256xf32, #tpu.memory_space<vmem>>, %arg4: memref<64x5xf32, #tpu.memory_space<vmem>>, %arg5: memref<1x5xf32, #tpu.memory_space<vmem>>, %arg6: memref<2x64xf32, #tpu.memory_space<vmem>>, %arg7: memref<2x64xf32, #tpu.memory_space<vmem>>, %arg8: memref<16x5xf32, #tpu.memory_space<vmem>>, %arg9: memref<2x64xf32, #tpu.memory_space<vmem>>, %arg10: memref<2x64xf32, #tpu.memory_space<vmem>>, %arg11: memref<2x8x64xf32, #tpu.memory_space<vmem>>) attributes {dimension_semantics = [], scalar_prefetch = 0 : i64, scratch_operands = 1 : i64, tpu.core_type = #tpu.core_type<tc>} {
    %c0 = arith.constant 0 : index
    %c0_0 = arith.constant 0 : index
    %0 = vector.load %arg1[%c0, %c0_0] : memref<16x256xf32, #tpu.memory_space<vmem>>, vector<16x256xf32>
    %c0_1 = arith.constant 0 : index
    %c0_2 = arith.constant 0 : index
    %1 = vector.load %arg2[%c0_1, %c0_2] : memref<64x256xf32, #tpu.memory_space<vmem>>, vector<64x256xf32>
    %c0_3 = arith.constant 0 : index
    %c0_4 = arith.constant 0 : index
    %2 = vector.load %arg3[%c0_3, %c0_4] : memref<1x256xf32, #tpu.memory_space<vmem>>, vector<1x256xf32>
    %c0_5 = arith.constant 0 : index
    %c0_6 = arith.constant 0 : index
    %3 = vector.load %arg6[%c0_5, %c0_6] : memref<2x64xf32, #tpu.memory_space<vmem>>, vector<2x64xf32>
    %c0_7 = arith.constant 0 : index
    %c0_8 = arith.constant 0 : index
    %4 = vector.load %arg7[%c0_7, %c0_8] : memref<2x64xf32, #tpu.memory_space<vmem>>, vector<2x64xf32>
    %c0_9 = arith.constant 0 : index
    %c0_10 = arith.constant 0 : index
    %c0_11 = arith.constant 0 : index
    %5 = vector.load %arg0[%c0_9, %c0_10, %c0_11] : memref<2x8x16xf32, #tpu.memory_space<vmem>>, vector<2x1x16xf32>
    %6 = vector.shape_cast %5 : vector<2x1x16xf32> to vector<2x16xf32>
    %cst = arith.constant dense<0.000000e+00> : vector<2x256xf32>
    %7 = tpu.matmul %6, %0, %cst {dimension_numbers = #tpu.dot_dimension_numbers<[1], [0], [0], [1], [0, 0, 1, 1], [], []>} : vector<2x16xf32>, vector<16x256xf32>, vector<2x256xf32> -> vector<2x256xf32>
    %cst_12 = arith.constant dense<0.000000e+00> : vector<2x256xf32>
    %8 = tpu.matmul %3, %1, %cst_12 {dimension_numbers = #tpu.dot_dimension_numbers<[1], [0], [0], [1], [0, 0, 1, 1], [], []>} : vector<2x64xf32>, vector<64x256xf32>, vector<2x256xf32> -> vector<2x256xf32>
    %9 = arith.addf %7, %8 : vector<2x256xf32>
    %10 = vector.broadcast %2 : vector<1x256xf32> to vector<2x256xf32>
    %11 = arith.addf %9, %10 : vector<2x256xf32>
    %12 = vector.extract_strided_slice %11 {offsets = [0, 0], sizes = [2, 64], strides = [1, 1]} : vector<2x256xf32> to vector<2x64xf32>
    %13 = arith.negf %12 : vector<2x64xf32>
    %14 = math.exp %13 : vector<2x64xf32>
    %cst_13 = arith.constant 1.000000e+00 : f32
    %15 = vector.broadcast %cst_13 : f32 to vector<2x64xf32>
    %16 = arith.addf %15, %14 : vector<2x64xf32>
    %17 = arith.divf %15, %16 : vector<2x64xf32>
    %18 = vector.extract_strided_slice %11 {offsets = [0, 64], sizes = [2, 64], strides = [1, 1]} : vector<2x256xf32> to vector<2x64xf32>
    %19 = arith.negf %18 : vector<2x64xf32>
    %20 = math.exp %19 : vector<2x64xf32>
    %cst_14 = arith.constant 1.000000e+00 : f32
    %21 = vector.broadcast %cst_14 : f32 to vector<2x64xf32>
    %22 = arith.addf %21, %20 : vector<2x64xf32>
    %23 = arith.divf %21, %22 : vector<2x64xf32>
    %24 = vector.extract_strided_slice %11 {offsets = [0, 128], sizes = [2, 64], strides = [1, 1]} : vector<2x256xf32> to vector<2x64xf32>
    %25 = math.tanh %24 : vector<2x64xf32>
    %26 = vector.extract_strided_slice %11 {offsets = [0, 192], sizes = [2, 64], strides = [1, 1]} : vector<2x256xf32> to vector<2x64xf32>
    %27 = arith.negf %26 : vector<2x64xf32>
    %28 = math.exp %27 : vector<2x64xf32>
    %cst_15 = arith.constant 1.000000e+00 : f32
    %29 = vector.broadcast %cst_15 : f32 to vector<2x64xf32>
    %30 = arith.addf %29, %28 : vector<2x64xf32>
    %31 = arith.divf %29, %30 : vector<2x64xf32>
    %32 = arith.mulf %23, %4 : vector<2x64xf32>
    %33 = arith.mulf %17, %25 : vector<2x64xf32>
    %34 = arith.addf %32, %33 : vector<2x64xf32>
    %35 = math.tanh %34 : vector<2x64xf32>
    %36 = arith.mulf %31, %35 : vector<2x64xf32>
    %c0_16 = arith.constant 0 : index
    %c0_17 = arith.constant 0 : index
    %c0_18 = arith.constant 0 : index
    %37 = vector.load %arg11[%c0_16, %c0_17, %c0_18] : memref<2x8x64xf32, #tpu.memory_space<vmem>>, vector<2x1x64xf32>
    %38 = vector.shape_cast %37 : vector<2x1x64xf32> to vector<2x64xf32>
    %39 = vector.shape_cast %36 : vector<2x64xf32> to vector<2x1x64xf32>
    tpu.vector_store %arg11[%c0_16, %c0_17, %c0_18], %39 {strides = array<i32>} : memref<2x8x64xf32, #tpu.memory_space<vmem>>, vector<2x1x64xf32>,
    %c0_19 = arith.constant 0 : index
    %c1 = arith.constant 1 : index
    %c0_20 = arith.constant 0 : index
    %40 = vector.load %arg0[%c0_19, %c1, %c0_20] : memref<2x8x16xf32, #tpu.memory_space<vmem>>, vector<2x1x16xf32>
    %41 = vector.shape_cast %40 : vector<2x1x16xf32> to vector<2x16xf32>
    %cst_21 = arith.constant dense<0.000000e+00> : vector<2x256xf32>
    %42 = tpu.matmul %41, %0, %cst_21 {dimension_numbers = #tpu.dot_dimension_numbers<[1], [0], [0], [1], [0, 0, 1, 1], [], []>} : vector<2x16xf32>, vector<16x256xf32>, vector<2x256xf32> -> vector<2x256xf32>
    %cst_22 = arith.constant dense<0.000000e+00> : vector<2x256xf32>
    %43 = tpu.matmul %36, %1, %cst_22 {dimension_numbers = #tpu.dot_dimension_numbers<[1], [0], [0], [1], [0, 0, 1, 1], [], []>} : vector<2x64xf32>, vector<64x256xf32>, vector<2x256xf32> -> vector<2x256xf32>
    %44 = arith.addf %42, %43 : vector<2x256xf32>
    %45 = vector.broadcast %2 : vector<1x256xf32> to vector<2x256xf32>
    %46 = arith.addf %44, %45 : vector<2x256xf32>
    %47 = vector.extract_strided_slice %46 {offsets = [0, 0], sizes = [2, 64], strides = [1, 1]} : vector<2x256xf32> to vector<2x64xf32>
    %48 = arith.negf %47 : vector<2x64xf32>
    %49 = math.exp %48 : vector<2x64xf32>
    %cst_23 = arith.constant 1.000000e+00 : f32
    %50 = vector.broadcast %cst_23 : f32 to vector<2x64xf32>
    %51 = arith.addf %50, %49 : vector<2x64xf32>
    %52 = arith.divf %50, %51 : vector<2x64xf32>
    %53 = vector.extract_strided_slice %46 {offsets = [0, 64], sizes = [2, 64], strides = [1, 1]} : vector<2x256xf32> to vector<2x64xf32>
    %54 = arith.negf %53 : vector<2x64xf32>
    %55 = math.exp %54 : vector<2x64xf32>
    %cst_24 = arith.constant 1.000000e+00 : f32
    %56 = vector.broadcast %cst_24 : f32 to vector<2x64xf32>
    %57 = arith.addf %56, %55 : vector<2x64xf32>
    %58 = arith.divf %56, %57 : vector<2x64xf32>
    %59 = vector.extract_strided_slice %46 {offsets = [0, 128], sizes = [2, 64], strides = [1, 1]} : vector<2x256xf32> to vector<2x64xf32>
    %60 = math.tanh %59 : vector<2x64xf32>
    %61 = vector.extract_strided_slice %46 {offsets = [0, 192], sizes = [2, 64], strides = [1, 1]} : vector<2x256xf32> to vector<2x64xf32>
    %62 = arith.negf %61 : vector<2x64xf32>
    %63 = math.exp %62 : vector<2x64xf32>
    %cst_25 = arith.constant 1.000000e+00 : f32
    %64 = vector.broadcast %cst_25 : f32 to vector<2x64xf32>
    %65 = arith.addf %64, %63 : vector<2x64xf32>
    %66 = arith.divf %64, %65 : vector<2x64xf32>
    %67 = arith.mulf %58, %34 : vector<2x64xf32>
    %68 = arith.mulf %52, %60 : vector<2x64xf32>
    %69 = arith.addf %67, %68 : vector<2x64xf32>
    %70 = math.tanh %69 : vector<2x64xf32>
    %71 = arith.mulf %66, %70 : vector<2x64xf32>
    %c0_26 = arith.constant 0 : index
    %c1_27 = arith.constant 1 : index
    %c0_28 = arith.constant 0 : index
    %72 = vector.load %arg11[%c0_26, %c1_27, %c0_28] : memref<2x8x64xf32, #tpu.memory_space<vmem>>, vector<2x1x64xf32>
    %73 = vector.shape_cast %72 : vector<2x1x64xf32> to vector<2x64xf32>
    %74 = vector.shape_cast %71 : vector<2x64xf32> to vector<2x1x64xf32>
    tpu.vector_store %arg11[%c0_26, %c1_27, %c0_28], %74 {strides = array<i32>} : memref<2x8x64xf32, #tpu.memory_space<vmem>>, vector<2x1x64xf32>,
    %c0_29 = arith.constant 0 : index
    %c2 = arith.constant 2 : index
    %c0_30 = arith.constant 0 : index
    %75 = vector.load %arg0[%c0_29, %c2, %c0_30] : memref<2x8x16xf32, #tpu.memory_space<vmem>>, vector<2x1x16xf32>
    %76 = vector.shape_cast %75 : vector<2x1x16xf32> to vector<2x16xf32>
    %cst_31 = arith.constant dense<0.000000e+00> : vector<2x256xf32>
    %77 = tpu.matmul %76, %0, %cst_31 {dimension_numbers = #tpu.dot_dimension_numbers<[1], [0], [0], [1], [0, 0, 1, 1], [], []>} : vector<2x16xf32>, vector<16x256xf32>, vector<2x256xf32> -> vector<2x256xf32>
    %cst_32 = arith.constant dense<0.000000e+00> : vector<2x256xf32>
    %78 = tpu.matmul %71, %1, %cst_32 {dimension_numbers = #tpu.dot_dimension_numbers<[1], [0], [0], [1], [0, 0, 1, 1], [], []>} : vector<2x64xf32>, vector<64x256xf32>, vector<2x256xf32> -> vector<2x256xf32>
    %79 = arith.addf %77, %78 : vector<2x256xf32>
    %80 = vector.broadcast %2 : vector<1x256xf32> to vector<2x256xf32>
    %81 = arith.addf %79, %80 : vector<2x256xf32>
    %82 = vector.extract_strided_slice %81 {offsets = [0, 0], sizes = [2, 64], strides = [1, 1]} : vector<2x256xf32> to vector<2x64xf32>
    %83 = arith.negf %82 : vector<2x64xf32>
    %84 = math.exp %83 : vector<2x64xf32>
    %cst_33 = arith.constant 1.000000e+00 : f32
    %85 = vector.broadcast %cst_33 : f32 to vector<2x64xf32>
    %86 = arith.addf %85, %84 : vector<2x64xf32>
    %87 = arith.divf %85, %86 : vector<2x64xf32>
    %88 = vector.extract_strided_slice %81 {offsets = [0, 64], sizes = [2, 64], strides = [1, 1]} : vector<2x256xf32> to vector<2x64xf32>
    %89 = arith.negf %88 : vector<2x64xf32>
    %90 = math.exp %89 : vector<2x64xf32>
    %cst_34 = arith.constant 1.000000e+00 : f32
    %91 = vector.broadcast %cst_34 : f32 to vector<2x64xf32>
    %92 = arith.addf %91, %90 : vector<2x64xf32>
    %93 = arith.divf %91, %92 : vector<2x64xf32>
    %94 = vector.extract_strided_slice %81 {offsets = [0, 128], sizes = [2, 64], strides = [1, 1]} : vector<2x256xf32> to vector<2x64xf32>
    %95 = math.tanh %94 : vector<2x64xf32>
    %96 = vector.extract_strided_slice %81 {offsets = [0, 192], sizes = [2, 64], strides = [1, 1]} : vector<2x256xf32> to vector<2x64xf32>
    %97 = arith.negf %96 : vector<2x64xf32>
    %98 = math.exp %97 : vector<2x64xf32>
    %cst_35 = arith.constant 1.000000e+00 : f32
    %99 = vector.broadcast %cst_35 : f32 to vector<2x64xf32>
    %100 = arith.addf %99, %98 : vector<2x64xf32>
    %101 = arith.divf %99, %100 : vector<2x64xf32>
    %102 = arith.mulf %93, %69 : vector<2x64xf32>
    %103 = arith.mulf %87, %95 : vector<2x64xf32>
    %104 = arith.addf %102, %103 : vector<2x64xf32>
    %105 = math.tanh %104 : vector<2x64xf32>
    %106 = arith.mulf %101, %105 : vector<2x64xf32>
    %c0_36 = arith.constant 0 : index
    %c2_37 = arith.constant 2 : index
    %c0_38 = arith.constant 0 : index
    %107 = vector.load %arg11[%c0_36, %c2_37, %c0_38] : memref<2x8x64xf32, #tpu.memory_space<vmem>>, vector<2x1x64xf32>
    %108 = vector.shape_cast %107 : vector<2x1x64xf32> to vector<2x64xf32>
    %109 = vector.shape_cast %106 : vector<2x64xf32> to vector<2x1x64xf32>
    tpu.vector_store %arg11[%c0_36, %c2_37, %c0_38], %109 {strides = array<i32>} : memref<2x8x64xf32, #tpu.memory_space<vmem>>, vector<2x1x64xf32>,
    %c0_39 = arith.constant 0 : index
    %c3 = arith.constant 3 : index
    %c0_40 = arith.constant 0 : index
    %110 = vector.load %arg0[%c0_39, %c3, %c0_40] : memref<2x8x16xf32, #tpu.memory_space<vmem>>, vector<2x1x16xf32>
    %111 = vector.shape_cast %110 : vector<2x1x16xf32> to vector<2x16xf32>
    %cst_41 = arith.constant dense<0.000000e+00> : vector<2x256xf32>
    %112 = tpu.matmul %111, %0, %cst_41 {dimension_numbers = #tpu.dot_dimension_numbers<[1], [0], [0], [1], [0, 0, 1, 1], [], []>} : vector<2x16xf32>, vector<16x256xf32>, vector<2x256xf32> -> vector<2x256xf32>
    %cst_42 = arith.constant dense<0.000000e+00> : vector<2x256xf32>
    %113 = tpu.matmul %106, %1, %cst_42 {dimension_numbers = #tpu.dot_dimension_numbers<[1], [0], [0], [1], [0, 0, 1, 1], [], []>} : vector<2x64xf32>, vector<64x256xf32>, vector<2x256xf32> -> vector<2x256xf32>
    %114 = arith.addf %112, %113 : vector<2x256xf32>
    %115 = vector.broadcast %2 : vector<1x256xf32> to vector<2x256xf32>
    %116 = arith.addf %114, %115 : vector<2x256xf32>
    %117 = vector.extract_strided_slice %116 {offsets = [0, 0], sizes = [2, 64], strides = [1, 1]} : vector<2x256xf32> to vector<2x64xf32>
    %118 = arith.negf %117 : vector<2x64xf32>
    %119 = math.exp %118 : vector<2x64xf32>
    %cst_43 = arith.constant 1.000000e+00 : f32
    %120 = vector.broadcast %cst_43 : f32 to vector<2x64xf32>
    %121 = arith.addf %120, %119 : vector<2x64xf32>
    %122 = arith.divf %120, %121 : vector<2x64xf32>
    %123 = vector.extract_strided_slice %116 {offsets = [0, 64], sizes = [2, 64], strides = [1, 1]} : vector<2x256xf32> to vector<2x64xf32>
    %124 = arith.negf %123 : vector<2x64xf32>
    %125 = math.exp %124 : vector<2x64xf32>
    %cst_44 = arith.constant 1.000000e+00 : f32
    %126 = vector.broadcast %cst_44 : f32 to vector<2x64xf32>
    %127 = arith.addf %126, %125 : vector<2x64xf32>
    %128 = arith.divf %126, %127 : vector<2x64xf32>
    %129 = vector.extract_strided_slice %116 {offsets = [0, 128], sizes = [2, 64], strides = [1, 1]} : vector<2x256xf32> to vector<2x64xf32>
    %130 = math.tanh %129 : vector<2x64xf32>
    %131 = vector.extract_strided_slice %116 {offsets = [0, 192], sizes = [2, 64], strides = [1, 1]} : vector<2x256xf32> to vector<2x64xf32>
    %132 = arith.negf %131 : vector<2x64xf32>
    %133 = math.exp %132 : vector<2x64xf32>
    %cst_45 = arith.constant 1.000000e+00 : f32
    %134 = vector.broadcast %cst_45 : f32 to vector<2x64xf32>
    %135 = arith.addf %134, %133 : vector<2x64xf32>
    %136 = arith.divf %134, %135 : vector<2x64xf32>
    %137 = arith.mulf %128, %104 : vector<2x64xf32>
    %138 = arith.mulf %122, %130 : vector<2x64xf32>
    %139 = arith.addf %137, %138 : vector<2x64xf32>
    %140 = math.tanh %139 : vector<2x64xf32>
    %141 = arith.mulf %136, %140 : vector<2x64xf32>
    %c0_46 = arith.constant 0 : index
    %c3_47 = arith.constant 3 : index
    %c0_48 = arith.constant 0 : index
    %142 = vector.load %arg11[%c0_46, %c3_47, %c0_48] : memref<2x8x64xf32, #tpu.memory_space<vmem>>, vector<2x1x64xf32>
    %143 = vector.shape_cast %142 : vector<2x1x64xf32> to vector<2x64xf32>
    %144 = vector.shape_cast %141 : vector<2x64xf32> to vector<2x1x64xf32>
    tpu.vector_store %arg11[%c0_46, %c3_47, %c0_48], %144 {strides = array<i32>} : memref<2x8x64xf32, #tpu.memory_space<vmem>>, vector<2x1x64xf32>,
    %c0_49 = arith.constant 0 : index
    %c4 = arith.constant 4 : index
    %c0_50 = arith.constant 0 : index
    %145 = vector.load %arg0[%c0_49, %c4, %c0_50] : memref<2x8x16xf32, #tpu.memory_space<vmem>>, vector<2x1x16xf32>
    %146 = vector.shape_cast %145 : vector<2x1x16xf32> to vector<2x16xf32>
    %cst_51 = arith.constant dense<0.000000e+00> : vector<2x256xf32>
    %147 = tpu.matmul %146, %0, %cst_51 {dimension_numbers = #tpu.dot_dimension_numbers<[1], [0], [0], [1], [0, 0, 1, 1], [], []>} : vector<2x16xf32>, vector<16x256xf32>, vector<2x256xf32> -> vector<2x256xf32>
    %cst_52 = arith.constant dense<0.000000e+00> : vector<2x256xf32>
    %148 = tpu.matmul %141, %1, %cst_52 {dimension_numbers = #tpu.dot_dimension_numbers<[1], [0], [0], [1], [0, 0, 1, 1], [], []>} : vector<2x64xf32>, vector<64x256xf32>, vector<2x256xf32> -> vector<2x256xf32>
    %149 = arith.addf %147, %148 : vector<2x256xf32>
    %150 = vector.broadcast %2 : vector<1x256xf32> to vector<2x256xf32>
    %151 = arith.addf %149, %150 : vector<2x256xf32>
    %152 = vector.extract_strided_slice %151 {offsets = [0, 0], sizes = [2, 64], strides = [1, 1]} : vector<2x256xf32> to vector<2x64xf32>
    %153 = arith.negf %152 : vector<2x64xf32>
    %154 = math.exp %153 : vector<2x64xf32>
    %cst_53 = arith.constant 1.000000e+00 : f32
    %155 = vector.broadcast %cst_53 : f32 to vector<2x64xf32>
    %156 = arith.addf %155, %154 : vector<2x64xf32>
    %157 = arith.divf %155, %156 : vector<2x64xf32>
    %158 = vector.extract_strided_slice %151 {offsets = [0, 64], sizes = [2, 64], strides = [1, 1]} : vector<2x256xf32> to vector<2x64xf32>
    %159 = arith.negf %158 : vector<2x64xf32>
    %160 = math.exp %159 : vector<2x64xf32>
    %cst_54 = arith.constant 1.000000e+00 : f32
    %161 = vector.broadcast %cst_54 : f32 to vector<2x64xf32>
    %162 = arith.addf %161, %160 : vector<2x64xf32>
    %163 = arith.divf %161, %162 : vector<2x64xf32>
    %164 = vector.extract_strided_slice %151 {offsets = [0, 128], sizes = [2, 64], strides = [1, 1]} : vector<2x256xf32> to vector<2x64xf32>
    %165 = math.tanh %164 : vector<2x64xf32>
    %166 = vector.extract_strided_slice %151 {offsets = [0, 192], sizes = [2, 64], strides = [1, 1]} : vector<2x256xf32> to vector<2x64xf32>
    %167 = arith.negf %166 : vector<2x64xf32>
    %168 = math.exp %167 : vector<2x64xf32>
    %cst_55 = arith.constant 1.000000e+00 : f32
    %169 = vector.broadcast %cst_55 : f32 to vector<2x64xf32>
    %170 = arith.addf %169, %168 : vector<2x64xf32>
    %171 = arith.divf %169, %170 : vector<2x64xf32>
    %172 = arith.mulf %163, %139 : vector<2x64xf32>
    %173 = arith.mulf %157, %165 : vector<2x64xf32>
    %174 = arith.addf %172, %173 : vector<2x64xf32>
    %175 = math.tanh %174 : vector<2x64xf32>
    %176 = arith.mulf %171, %175 : vector<2x64xf32>
    %c0_56 = arith.constant 0 : index
    %c4_57 = arith.constant 4 : index
    %c0_58 = arith.constant 0 : index
    %177 = vector.load %arg11[%c0_56, %c4_57, %c0_58] : memref<2x8x64xf32, #tpu.memory_space<vmem>>, vector<2x1x64xf32>
    %178 = vector.shape_cast %177 : vector<2x1x64xf32> to vector<2x64xf32>
    %179 = vector.shape_cast %176 : vector<2x64xf32> to vector<2x1x64xf32>
    tpu.vector_store %arg11[%c0_56, %c4_57, %c0_58], %179 {strides = array<i32>} : memref<2x8x64xf32, #tpu.memory_space<vmem>>, vector<2x1x64xf32>,
    %c0_59 = arith.constant 0 : index
    %c5 = arith.constant 5 : index
    %c0_60 = arith.constant 0 : index
    %180 = vector.load %arg0[%c0_59, %c5, %c0_60] : memref<2x8x16xf32, #tpu.memory_space<vmem>>, vector<2x1x16xf32>
    %181 = vector.shape_cast %180 : vector<2x1x16xf32> to vector<2x16xf32>
    %cst_61 = arith.constant dense<0.000000e+00> : vector<2x256xf32>
    %182 = tpu.matmul %181, %0, %cst_61 {dimension_numbers = #tpu.dot_dimension_numbers<[1], [0], [0], [1], [0, 0, 1, 1], [], []>} : vector<2x16xf32>, vector<16x256xf32>, vector<2x256xf32> -> vector<2x256xf32>
    %cst_62 = arith.constant dense<0.000000e+00> : vector<2x256xf32>
    %183 = tpu.matmul %176, %1, %cst_62 {dimension_numbers = #tpu.dot_dimension_numbers<[1], [0], [0], [1], [0, 0, 1, 1], [], []>} : vector<2x64xf32>, vector<64x256xf32>, vector<2x256xf32> -> vector<2x256xf32>
    %184 = arith.addf %182, %183 : vector<2x256xf32>
    %185 = vector.broadcast %2 : vector<1x256xf32> to vector<2x256xf32>
    %186 = arith.addf %184, %185 : vector<2x256xf32>
    %187 = vector.extract_strided_slice %186 {offsets = [0, 0], sizes = [2, 64], strides = [1, 1]} : vector<2x256xf32> to vector<2x64xf32>
    %188 = arith.negf %187 : vector<2x64xf32>
    %189 = math.exp %188 : vector<2x64xf32>
    %cst_63 = arith.constant 1.000000e+00 : f32
    %190 = vector.broadcast %cst_63 : f32 to vector<2x64xf32>
    %191 = arith.addf %190, %189 : vector<2x64xf32>
    %192 = arith.divf %190, %191 : vector<2x64xf32>
    %193 = vector.extract_strided_slice %186 {offsets = [0, 64], sizes = [2, 64], strides = [1, 1]} : vector<2x256xf32> to vector<2x64xf32>
    %194 = arith.negf %193 : vector<2x64xf32>
    %195 = math.exp %194 : vector<2x64xf32>
    %cst_64 = arith.constant 1.000000e+00 : f32
    %196 = vector.broadcast %cst_64 : f32 to vector<2x64xf32>
    %197 = arith.addf %196, %195 : vector<2x64xf32>
    %198 = arith.divf %196, %197 : vector<2x64xf32>
    %199 = vector.extract_strided_slice %186 {offsets = [0, 128], sizes = [2, 64], strides = [1, 1]} : vector<2x256xf32> to vector<2x64xf32>
    %200 = math.tanh %199 : vector<2x64xf32>
    %201 = vector.extract_strided_slice %186 {offsets = [0, 192], sizes = [2, 64], strides = [1, 1]} : vector<2x256xf32> to vector<2x64xf32>
    %202 = arith.negf %201 : vector<2x64xf32>
    %203 = math.exp %202 : vector<2x64xf32>
    %cst_65 = arith.constant 1.000000e+00 : f32
    %204 = vector.broadcast %cst_65 : f32 to vector<2x64xf32>
    %205 = arith.addf %204, %203 : vector<2x64xf32>
    %206 = arith.divf %204, %205 : vector<2x64xf32>
    %207 = arith.mulf %198, %174 : vector<2x64xf32>
    %208 = arith.mulf %192, %200 : vector<2x64xf32>
    %209 = arith.addf %207, %208 : vector<2x64xf32>
    %210 = math.tanh %209 : vector<2x64xf32>
    %211 = arith.mulf %206, %210 : vector<2x64xf32>
    %c0_66 = arith.constant 0 : index
    %c5_67 = arith.constant 5 : index
    %c0_68 = arith.constant 0 : index
    %212 = vector.load %arg11[%c0_66, %c5_67, %c0_68] : memref<2x8x64xf32, #tpu.memory_space<vmem>>, vector<2x1x64xf32>
    %213 = vector.shape_cast %212 : vector<2x1x64xf32> to vector<2x64xf32>
    %214 = vector.shape_cast %211 : vector<2x64xf32> to vector<2x1x64xf32>
    tpu.vector_store %arg11[%c0_66, %c5_67, %c0_68], %214 {strides = array<i32>} : memref<2x8x64xf32, #tpu.memory_space<vmem>>, vector<2x1x64xf32>,
    %c0_69 = arith.constant 0 : index
    %c6 = arith.constant 6 : index
    %c0_70 = arith.constant 0 : index
    %215 = vector.load %arg0[%c0_69, %c6, %c0_70] : memref<2x8x16xf32, #tpu.memory_space<vmem>>, vector<2x1x16xf32>
    %216 = vector.shape_cast %215 : vector<2x1x16xf32> to vector<2x16xf32>
    %cst_71 = arith.constant dense<0.000000e+00> : vector<2x256xf32>
    %217 = tpu.matmul %216, %0, %cst_71 {dimension_numbers = #tpu.dot_dimension_numbers<[1], [0], [0], [1], [0, 0, 1, 1], [], []>} : vector<2x16xf32>, vector<16x256xf32>, vector<2x256xf32> -> vector<2x256xf32>
    %cst_72 = arith.constant dense<0.000000e+00> : vector<2x256xf32>
    %218 = tpu.matmul %211, %1, %cst_72 {dimension_numbers = #tpu.dot_dimension_numbers<[1], [0], [0], [1], [0, 0, 1, 1], [], []>} : vector<2x64xf32>, vector<64x256xf32>, vector<2x256xf32> -> vector<2x256xf32>
    %219 = arith.addf %217, %218 : vector<2x256xf32>
    %220 = vector.broadcast %2 : vector<1x256xf32> to vector<2x256xf32>
    %221 = arith.addf %219, %220 : vector<2x256xf32>
    %222 = vector.extract_strided_slice %221 {offsets = [0, 0], sizes = [2, 64], strides = [1, 1]} : vector<2x256xf32> to vector<2x64xf32>
    %223 = arith.negf %222 : vector<2x64xf32>
    %224 = math.exp %223 : vector<2x64xf32>
    %cst_73 = arith.constant 1.000000e+00 : f32
    %225 = vector.broadcast %cst_73 : f32 to vector<2x64xf32>
    %226 = arith.addf %225, %224 : vector<2x64xf32>
    %227 = arith.divf %225, %226 : vector<2x64xf32>
    %228 = vector.extract_strided_slice %221 {offsets = [0, 64], sizes = [2, 64], strides = [1, 1]} : vector<2x256xf32> to vector<2x64xf32>
    %229 = arith.negf %228 : vector<2x64xf32>
    %230 = math.exp %229 : vector<2x64xf32>
    %cst_74 = arith.constant 1.000000e+00 : f32
    %231 = vector.broadcast %cst_74 : f32 to vector<2x64xf32>
    %232 = arith.addf %231, %230 : vector<2x64xf32>
    %233 = arith.divf %231, %232 : vector<2x64xf32>
    %234 = vector.extract_strided_slice %221 {offsets = [0, 128], sizes = [2, 64], strides = [1, 1]} : vector<2x256xf32> to vector<2x64xf32>
    %235 = math.tanh %234 : vector<2x64xf32>
    %236 = vector.extract_strided_slice %221 {offsets = [0, 192], sizes = [2, 64], strides = [1, 1]} : vector<2x256xf32> to vector<2x64xf32>
    %237 = arith.negf %236 : vector<2x64xf32>
    %238 = math.exp %237 : vector<2x64xf32>
    %cst_75 = arith.constant 1.000000e+00 : f32
    %239 = vector.broadcast %cst_75 : f32 to vector<2x64xf32>
    %240 = arith.addf %239, %238 : vector<2x64xf32>
    %241 = arith.divf %239, %240 : vector<2x64xf32>
    %242 = arith.mulf %233, %209 : vector<2x64xf32>
    %243 = arith.mulf %227, %235 : vector<2x64xf32>
    %244 = arith.addf %242, %243 : vector<2x64xf32>
    %245 = math.tanh %244 : vector<2x64xf32>
    %246 = arith.mulf %241, %245 : vector<2x64xf32>
    %c0_76 = arith.constant 0 : index
    %c6_77 = arith.constant 6 : index
    %c0_78 = arith.constant 0 : index
    %247 = vector.load %arg11[%c0_76, %c6_77, %c0_78] : memref<2x8x64xf32, #tpu.memory_space<vmem>>, vector<2x1x64xf32>
    %248 = vector.shape_cast %247 : vector<2x1x64xf32> to vector<2x64xf32>
    %249 = vector.shape_cast %246 : vector<2x64xf32> to vector<2x1x64xf32>
    tpu.vector_store %arg11[%c0_76, %c6_77, %c0_78], %249 {strides = array<i32>} : memref<2x8x64xf32, #tpu.memory_space<vmem>>, vector<2x1x64xf32>,
    %c0_79 = arith.constant 0 : index
    %c7 = arith.constant 7 : index
    %c0_80 = arith.constant 0 : index
    %250 = vector.load %arg0[%c0_79, %c7, %c0_80] : memref<2x8x16xf32, #tpu.memory_space<vmem>>, vector<2x1x16xf32>
    %251 = vector.shape_cast %250 : vector<2x1x16xf32> to vector<2x16xf32>
    %cst_81 = arith.constant dense<0.000000e+00> : vector<2x256xf32>
    %252 = tpu.matmul %251, %0, %cst_81 {dimension_numbers = #tpu.dot_dimension_numbers<[1], [0], [0], [1], [0, 0, 1, 1], [], []>} : vector<2x16xf32>, vector<16x256xf32>, vector<2x256xf32> -> vector<2x256xf32>
    %cst_82 = arith.constant dense<0.000000e+00> : vector<2x256xf32>
    %253 = tpu.matmul %246, %1, %cst_82 {dimension_numbers = #tpu.dot_dimension_numbers<[1], [0], [0], [1], [0, 0, 1, 1], [], []>} : vector<2x64xf32>, vector<64x256xf32>, vector<2x256xf32> -> vector<2x256xf32>
    %254 = arith.addf %252, %253 : vector<2x256xf32>
    %255 = vector.broadcast %2 : vector<1x256xf32> to vector<2x256xf32>
    %256 = arith.addf %254, %255 : vector<2x256xf32>
    %257 = vector.extract_strided_slice %256 {offsets = [0, 0], sizes = [2, 64], strides = [1, 1]} : vector<2x256xf32> to vector<2x64xf32>
    %258 = arith.negf %257 : vector<2x64xf32>
    %259 = math.exp %258 : vector<2x64xf32>
    %cst_83 = arith.constant 1.000000e+00 : f32
    %260 = vector.broadcast %cst_83 : f32 to vector<2x64xf32>
    %261 = arith.addf %260, %259 : vector<2x64xf32>
    %262 = arith.divf %260, %261 : vector<2x64xf32>
    %263 = vector.extract_strided_slice %256 {offsets = [0, 64], sizes = [2, 64], strides = [1, 1]} : vector<2x256xf32> to vector<2x64xf32>
    %264 = arith.negf %263 : vector<2x64xf32>
    %265 = math.exp %264 : vector<2x64xf32>
    %cst_84 = arith.constant 1.000000e+00 : f32
    %266 = vector.broadcast %cst_84 : f32 to vector<2x64xf32>
    %267 = arith.addf %266, %265 : vector<2x64xf32>
    %268 = arith.divf %266, %267 : vector<2x64xf32>
    %269 = vector.extract_strided_slice %256 {offsets = [0, 128], sizes = [2, 64], strides = [1, 1]} : vector<2x256xf32> to vector<2x64xf32>
    %270 = math.tanh %269 : vector<2x64xf32>
    %271 = vector.extract_strided_slice %256 {offsets = [0, 192], sizes = [2, 64], strides = [1, 1]} : vector<2x256xf32> to vector<2x64xf32>
    %272 = arith.negf %271 : vector<2x64xf32>
    %273 = math.exp %272 : vector<2x64xf32>
    %cst_85 = arith.constant 1.000000e+00 : f32
    %274 = vector.broadcast %cst_85 : f32 to vector<2x64xf32>
    %275 = arith.addf %274, %273 : vector<2x64xf32>
    %276 = arith.divf %274, %275 : vector<2x64xf32>
    %277 = arith.mulf %268, %244 : vector<2x64xf32>
    %278 = arith.mulf %262, %270 : vector<2x64xf32>
    %279 = arith.addf %277, %278 : vector<2x64xf32>
    %280 = math.tanh %279 : vector<2x64xf32>
    %281 = arith.mulf %276, %280 : vector<2x64xf32>
    %c0_86 = arith.constant 0 : index
    %c7_87 = arith.constant 7 : index
    %c0_88 = arith.constant 0 : index
    %282 = vector.load %arg11[%c0_86, %c7_87, %c0_88] : memref<2x8x64xf32, #tpu.memory_space<vmem>>, vector<2x1x64xf32>
    %283 = vector.shape_cast %282 : vector<2x1x64xf32> to vector<2x64xf32>
    %284 = vector.shape_cast %281 : vector<2x64xf32> to vector<2x1x64xf32>
    tpu.vector_store %arg11[%c0_86, %c7_87, %c0_88], %284 {strides = array<i32>} : memref<2x8x64xf32, #tpu.memory_space<vmem>>, vector<2x1x64xf32>,
    %c0_89 = arith.constant 0 : index
    %c0_90 = arith.constant 0 : index
    %285 = vector.load %arg9[%c0_89, %c0_90] : memref<2x64xf32, #tpu.memory_space<vmem>>, vector<2x64xf32>
    tpu.vector_store %arg9[%c0_89, %c0_90], %281 {strides = array<i32>} : memref<2x64xf32, #tpu.memory_space<vmem>>, vector<2x64xf32>,
    %c0_91 = arith.constant 0 : index
    %c0_92 = arith.constant 0 : index
    %286 = vector.load %arg10[%c0_91, %c0_92] : memref<2x64xf32, #tpu.memory_space<vmem>>, vector<2x64xf32>
    tpu.vector_store %arg10[%c0_91, %c0_92], %279 {strides = array<i32>} : memref<2x64xf32, #tpu.memory_space<vmem>>, vector<2x64xf32>,
    %c0_93 = arith.constant 0 : index
    %c0_94 = arith.constant 0 : index
    %c0_95 = arith.constant 0 : index
    %287 = vector.load %arg11[%c0_93, %c0_94, %c0_95] : memref<2x8x64xf32, #tpu.memory_space<vmem>>, vector<2x8x64xf32>
    %288 = vector.shape_cast %287 : vector<2x8x64xf32> to vector<16x64xf32>
    %c0_96 = arith.constant 0 : index
    %c0_97 = arith.constant 0 : index
    %289 = vector.load %arg4[%c0_96, %c0_97] : memref<64x5xf32, #tpu.memory_space<vmem>>, vector<64x5xf32>
    %cst_98 = arith.constant dense<0.000000e+00> : vector<16x5xf32>
    %290 = tpu.matmul %288, %289, %cst_98 {dimension_numbers = #tpu.dot_dimension_numbers<[1], [0], [0], [1], [0, 0, 1, 1], [], []>} : vector<16x64xf32>, vector<64x5xf32>, vector<16x5xf32> -> vector<16x5xf32>
    %c0_99 = arith.constant 0 : index
    %c0_100 = arith.constant 0 : index
    %291 = vector.load %arg5[%c0_99, %c0_100] : memref<1x5xf32, #tpu.memory_space<vmem>>, vector<1x5xf32>
    %292 = vector.broadcast %291 : vector<1x5xf32> to vector<16x5xf32>
    %293 = arith.addf %290, %292 : vector<16x5xf32>
    %c0_101 = arith.constant 0 : index
    %c0_102 = arith.constant 0 : index
    %294 = vector.load %arg8[%c0_101, %c0_102] : memref<16x5xf32, #tpu.memory_space<vmem>>, vector<16x5xf32>
    tpu.vector_store %arg8[%c0_101, %c0_102], %293 {strides = array<i32>} : memref<16x5xf32, #tpu.memory_space<vmem>>, vector<16x5xf32>,
    return
  }
}

</mosaic_0001>

<llo_original>
// kernel: fcnet_forward.1
$region0: #{fcnet_forward.1}
  #allocation0 [shape = 'u32[]', space=smem, size = 0x4, offset = 0x4, fixed_abs, tag = 'smem constant byte address 0x4 - core index']
  #allocation1 [shape = 'u32[144,128]{1,0:T(1,128)}', space=vmem, size = 0x12000, scoped, tag = 'internal scratch']
  #allocation2 [shape = 'f32[2,8,64]{2,1,0:T(8,128)}', space=vmem, size = 0x2000, scoped, tag = 'scratch operand']
  %s0 = inlined_call_operand.vmem [shape: f32[2,8,16], index: 0, kind: input, shape index: {}]
  %s1 = inlined_call_operand.vmem [shape: f32[16,256], index: 1, kind: input, shape index: {}]
  %s2 = inlined_call_operand.hbm [shape: f32[64,256], index: 2, kind: input, shape index: {}]
  %s3 = inlined_call_operand.vmem [shape: f32[1,256], index: 3, kind: input, shape index: {}]
  %s4 = inlined_call_operand.vmem [shape: f32[64,5], index: 4, kind: input, shape index: {}]
  %s5 = inlined_call_operand.vmem [shape: f32[1,5], index: 5, kind: input, shape index: {}]
  %s6 = inlined_call_operand.vmem [shape: f32[2,64], index: 6, kind: input, shape index: {}, may-alias: {6,9}]
  %s7 = inlined_call_operand.vmem [shape: f32[2,64], index: 7, kind: input, shape index: {}, may-alias: {7,10}]
  %s8 = inlined_call_operand.vmem [shape: f32[16,5], index: 8, kind: output, shape index: {0}]
  %s9 = inlined_call_operand.vmem [shape: f32[2,64], index: 9, kind: output, shape index: {1}, may-alias: {6,9}]
  %s10 = inlined_call_operand.vmem [shape: f32[2,64], index: 10, kind: output, shape index: {2}, may-alias: {7,10}]
  %11 = xla_tuple %s8, %s9, %s10
  %s12 = sld [smem:[#allocation0]]
  $region62: #{fcnet_forward.1} parent=0
    _
  %s14 = ssub.s32 1, %s12
  %s15 = scalar_select 0, %s14, %s12
  $region1: #{fcnet_forward.1} parent=0
    #allocation3 [shape = 'u8[65536]{0}', space=vmem, size = 0x10000, scoped, tag = 'input window, operand 2, single buffered']
    #allocation4 [shape = 's32[1]{0}', space=sflag, size = 0x4, scoped, tag = 'scoped memory for fcnet_forward.1']
    %16 = vsyncpa [#allocation4], 0
    // Predicated region
    $region2: #{fcnet_forward.1} parent=1 // pred_check
      _
    $region3: #{fcnet_forward.1} parent=1 // pred_check_branch
      %18 = sbr.rel (0) target = $region5
    $region4: #{fcnet_forward.1} parent=1 // pred_region
      _
    $region5: #{fcnet_forward.1} parent=1 // pred_fallthru
      _
    // Predicated region
    $region6: #{fcnet_forward.1} parent=1 // pred_check
      _
    $region7: #{fcnet_forward.1} parent=1 // pred_check_branch
      %20 = sbr.rel (0) target = $region9
    $region8: #{fcnet_forward.1} parent=1 // pred_region
      _
    $region9: #{fcnet_forward.1} parent=1 // pred_fallthru
      _
    // Predicated region
    $region10: #{fcnet_forward.1} parent=1 // pred_check
      _
    $region11: #{fcnet_forward.1} parent=1 // pred_check_branch
      %22 = sbr.rel (0) target = $region13
    $region12: #{fcnet_forward.1} parent=1 // pred_region
      %s24 = ssub.s32 2048, 2048
      %25 = vsyncadd [#allocation4], %s24
      %s26 = sshll.u32 [#allocation3], 4
      %s27 = int_to_ptr.vmem [resolvable:$true] %s26
      %32 = dma.hbm_to_vmem [thread:$0]  %s2, 2048, %s27, [#allocation4], 256, 256, 16
    $region13: #{fcnet_forward.1} parent=1 // pred_fallthru
      _
    // Predicated region
    $region14: #{fcnet_forward.1} parent=1 // pred_check
      _
    $region15: #{fcnet_forward.1} parent=1 // pred_check_branch
      %34 = sbr.rel (0) target = $region17
    $region16: #{fcnet_forward.1} parent=1 // pred_region
      _
    $region17: #{fcnet_forward.1} parent=1 // pred_fallthru
      _
    // Predicated region
    $region18: #{fcnet_forward.1} parent=1 // pred_check
      _
    $region19: #{fcnet_forward.1} parent=1 // pred_check_branch
      %36 = sbr.rel (0) target = $region21
    $region20: #{fcnet_forward.1} parent=1 // pred_region
      _
    $region21: #{fcnet_forward.1} parent=1 // pred_fallthru
      _
    // Predicated region
    $region22: #{fcnet_forward.1} parent=1 // pred_check
      _
    $region23: #{fcnet_forward.1} parent=1 // pred_check_branch
      %38 = sbr.rel (0) target = $region25
    $region24: #{fcnet_forward.1} parent=1 // pred_region
      _
    $region25: #{fcnet_forward.1} parent=1 // pred_fallthru
      _
    // Predicated region
    $region26: #{fcnet_forward.1} parent=1 // pred_check
      _
    $region27: #{fcnet_forward.1} parent=1 // pred_check_branch
      %40 = sbr.rel (0) target = $region29
    $region28: #{fcnet_forward.1} parent=1 // pred_region
      _
    $region29: #{fcnet_forward.1} parent=1 // pred_fallthru
      _
    // Predicated region
    $region30: #{fcnet_forward.1} parent=1 // pred_check
      _
    $region31: #{fcnet_forward.1} parent=1 // pred_check_branch
      %42 = sbr.rel (0) target = $region33
    $region32: #{fcnet_forward.1} parent=1 // pred_region
      _
    $region33: #{fcnet_forward.1} parent=1 // pred_fallthru
      _
    // Predicated region
    $region34: #{fcnet_forward.1} parent=1 // pred_check
      _
    $region35: #{fcnet_forward.1} parent=1 // pred_check_branch
      %44 = sbr.rel (0) target = $region37
    $region36: #{fcnet_forward.1} parent=1 // pred_region
      %45 = dma.done [#allocation4], 2048
    $region37: #{fcnet_forward.1} parent=1 // pred_fallthru
      _
    %v46 = vld [vmem:[%s1] sm:$0xff]
    %v47 = vld [vmem:[%s1 + $0x8] sm:$0xff]
    %v48 = vld [vmem:[%s1 + $0x10] sm:$0xff]
    %v49 = vld [vmem:[%s1 + $0x18] sm:$0xff]
    %v50 = vld [vmem:[#allocation3] sm:$0xff]
    %v51 = vld [vmem:[#allocation3 + $0x8] sm:$0xff]
    %v52 = vld [vmem:[#allocation3 + $0x10] sm:$0xff]
    %v53 = vld [vmem:[#allocation3 + $0x18] sm:$0xff]
    %v54 = vld [vmem:[#allocation3 + $0x20] sm:$0xff]
    %v55 = vld [vmem:[#allocation3 + $0x28] sm:$0xff]
    %v56 = vld [vmem:[#allocation3 + $0x30] sm:$0xff]
    %v57 = vld [vmem:[#allocation3 + $0x38] sm:$0xff]
    %v58 = vld [vmem:[#allocation3 + $0x40] sm:$0xff]
    %v59 = vld [vmem:[#allocation3 + $0x48] sm:$0xff]
    %v60 = vld [vmem:[#allocation3 + $0x50] sm:$0xff]
    %v61 = vld [vmem:[#allocation3 + $0x58] sm:$0xff]
    %v62 = vld [vmem:[#allocation3 + $0x60] sm:$0xff]
    %v63 = vld [vmem:[#allocation3 + $0x68] sm:$0xff]
    %v64 = vld [vmem:[#allocation3 + $0x70] sm:$0xff]
    %v65 = vld [vmem:[#allocation3 + $0x78] sm:$0xff]
    %v66 = vld [vmem:[%s3] sm:$0x3]
    %v67 = vld [vmem:[%s6] sm:$0x3]
    %v68 = vld [vmem:[%s7] sm:$0x3]
    %v69 = vld [vmem:[%s0] sm:$0x1]
    %v70 = vld [vmem:[%s0 + $0x8] sm:$0x1]
    %vm71 = vcmask 523264
    %v73 = vsel %vm71, %v67, 0
    %75 = vmatprep.subr.mxu0 %v51
    %76 = vmatpush1.msra.mxu0 %v50
    %77 = vmatprep.subr.mxu0 %v53
    %78 = vmatpush1.msra.mxu0 %v52
    %79 = vmatprep.subr.mxu0 %v55
    %80 = vmatpush1.msra.mxu0 %v54
    %81 = vmatprep.subr.mxu0 %v57
    %82 = vmatpush1.msra.mxu0 %v56
    %83 = vmatprep.subr.mxu0 %v59
    %84 = vmatpush1.msra.mxu0 %v58
    %85 = vmatprep.subr.mxu0 %v61
    %86 = vmatpush1.msra.mxu0 %v60
    %87 = vmatprep.subr.mxu0 %v63
    %88 = vmatpush1.msra.mxu0 %v62
    %89 = vmatprep.subr.mxu0 %v65
    %90 = vmatpush1.msra.mxu0 %v64
    %91 = vmatprep.subr.mxu0 0.0
    %92 = vmatpush1.msra.mxu0 0.0
    %93 = vmatprep.subr.mxu0 0.0
    %94 = vmatpush1.msra.mxu0 0.0
    %95 = vmatprep.subr.mxu0 0.0
    %96 = vmatpush1.msra.mxu0 0.0
    %97 = vmatprep.subr.mxu0 0.0
    %98 = vmatpush1.msra.mxu0 0.0
    %99 = vmatprep.subr.mxu0 0.0
    %100 = vmatpush1.msra.mxu0 0.0
    %101 = vmatprep.subr.mxu0 0.0
    %102 = vmatpush1.msra.mxu0 0.0
    %103 = vmatprep.subr.mxu0 0.0
    %104 = vmatpush1.msra.mxu0 0.0
    %105 = vmatprep.subr.mxu0 0.0
    %106 = vmatpush1.msra.mxu0 0.0
    %107 = vmatprep.subr.mxu0 0.0
    %108 = vmatpush1.msra.mxu0 0.0
    %109 = vmatprep.subr.mxu0 0.0
    %110 = vmatpush1.msra.mxu0 0.0
    %111 = vmatprep.subr.mxu0 0.0
    %112 = vmatpush1.msra.mxu0 0.0
    %113 = vmatprep.subr.mxu0 0.0
    %114 = vmatpush1.msra.mxu0 0.0
    %115 = vmatprep.subr.mxu0 0.0
    %116 = vmatpush1.msra.mxu0 0.0
    %117 = vmatprep.subr.mxu0 0.0
    %118 = vmatpush1.msra.mxu0 0.0
    %119 = vmatprep.subr.mxu0 0.0
    %120 = vmatpush1.msra.mxu0 0.0
    %121 = vmatprep.subr.mxu0 0.0
    %122 = vmatpush1.msra.mxu0 0.0
    %123 = vmatprep.subr.mxu0 0.0
    %124 = vmatpush1.msra.mxu0 0.0
    %125 = vmatprep.subr.mxu0 0.0
    %126 = vmatpush1.msra.mxu0 0.0
    %127 = vmatprep.subr.mxu0 0.0
    %128 = vmatpush1.msra.mxu0 0.0
    %129 = vmatprep.subr.mxu0 0.0
    %130 = vmatpush1.msra.mxu0 0.0
    %131 = vmatprep.subr.mxu0 0.0
    %132 = vmatpush1.msra.mxu0 0.0
    %133 = vmatprep.subr.mxu0 0.0
    %134 = vmatpush1.msra.mxu0 0.0
    %135 = vmatprep.subr.mxu0 0.0
    %136 = vmatpush1.msra.mxu0 0.0
    %137 = vmatprep.subr.mxu0 0.0
    %138 = vmatpush1.msra.mxu0 0.0
    %139 = vmatprep.mubr.f32.mxu0 0.0
    %140 = vmatmul.mubr.f32.gmra.mrb[0].mxu0 %v73
    %v141 = vpop.f32.mrb[0].mxu0
    %v142 = vadd.f32 0.0, %v141
    %v143 = vpop.f32.mrb[0].mxu0
    %v144 = vadd.f32 0.0, %v143
    %145 = vdwg.mxu0
    %v148 = vrot.slane %v70, 7
    %vm149 = vcmask 1041409
    %v150 = vsel %vm149, %v148, %v69
    %vm151 = vcmask 130048
    %v152 = vsel %vm151, %v150, 0
    %154 = vmatprep.subr.mxu0 %v47
    %155 = vmatpush1.msra.mxu0 %v46
    %156 = vmatprep.subr.mxu0 %v49
    %157 = vmatpush1.msra.mxu0 %v48
    %158 = vmatprep.subr.mxu0 0.0
    %159 = vmatpush1.msra.mxu0 0.0
    %160 = vmatprep.subr.mxu0 0.0
    %161 = vmatpush1.msra.mxu0 0.0
    %162 = vmatprep.subr.mxu0 0.0
    %163 = vmatpush1.msra.mxu0 0.0
    %164 = vmatprep.subr.mxu0 0.0
    %165 = vmatpush1.msra.mxu0 0.0
    %166 = vmatprep.subr.mxu0 0.0
    %167 = vmatpush1.msra.mxu0 0.0
    %168 = vmatprep.subr.mxu0 0.0
    %169 = vmatpush1.msra.mxu0 0.0
    %170 = vmatprep.subr.mxu0 0.0
    %171 = vmatpush1.msra.mxu0 0.0
    %172 = vmatprep.subr.mxu0 0.0
    %173 = vmatpush1.msra.mxu0 0.0
    %174 = vmatprep.subr.mxu0 0.0
    %175 = vmatpush1.msra.mxu0 0.0
    %176 = vmatprep.subr.mxu0 0.0
    %177 = vmatpush1.msra.mxu0 0.0
    %178 = vmatprep.subr.mxu0 0.0
    %179 = vmatpush1.msra.mxu0 0.0
    %180 = vmatprep.subr.mxu0 0.0
    %181 = vmatpush1.msra.mxu0 0.0
    %182 = vmatprep.subr.mxu0 0.0
    %183 = vmatpush1.msra.mxu0 0.0
    %184 = vmatprep.subr.mxu0 0.0
    %185 = vmatpush1.msra.mxu0 0.0
    %186 = vmatprep.subr.mxu0 0.0
    %187 = vmatpush1.msra.mxu0 0.0
    %188 = vmatprep.subr.mxu0 0.0
    %189 = vmatpush1.msra.mxu0 0.0
    %190 = vmatprep.subr.mxu0 0.0
    %191 = vmatpush1.msra.mxu0 0.0
    %192 = vmatprep.subr.mxu0 0.0
    %193 = vmatpush1.msra.mxu0 0.0
    %194 = vmatprep.subr.mxu0 0.0
    %195 = vmatpush1.msra.mxu0 0.0
    %196 = vmatprep.subr.mxu0 0.0
    %197 = vmatpush1.msra.mxu0 0.0
    %198 = vmatprep.subr.mxu0 0.0
    %199 = vmatpush1.msra.mxu0 0.0
    %200 = vmatprep.subr.mxu0 0.0
    %201 = vmatpush1.msra.mxu0 0.0
    %202 = vmatprep.subr.mxu0 0.0
    %203 = vmatpush1.msra.mxu0 0.0
    %204 = vmatprep.subr.mxu0 0.0
    %205 = vmatpush1.msra.mxu0 0.0
    %206 = vmatprep.subr.mxu0 0.0
    %207 = vmatpush1.msra.mxu0 0.0
    %208 = vmatprep.subr.mxu0 0.0
    %209 = vmatpush1.msra.mxu0 0.0
    %210 = vmatprep.subr.mxu0 0.0
    %211 = vmatpush1.msra.mxu0 0.0
    %212 = vmatprep.subr.mxu0 0.0
    %213 = vmatpush1.msra.mxu0 0.0
    %214 = vmatprep.subr.mxu0 0.0
    %215 = vmatpush1.msra.mxu0 0.0
    %216 = vmatprep.subr.mxu0 0.0
    %217 = vmatpush1.msra.mxu0 0.0
    %218 = vmatprep.mubr.f32.mxu0 0.0
    %219 = vmatmul.mubr.f32.gmra.mrb[0].mxu0 %v152
    %v220 = vpop.f32.mrb[0].mxu0
    %v221 = vadd.f32 %v142, %v220
    %v222 = vpop.f32.mrb[0].mxu0
    %v223 = vadd.f32 %v144, %v222
    %224 = vdwg.mxu0
    %v226 = vlaneseq
    %v227 = vshrl.u32 %v226, 7
    %v228 = vsub.s32 0, %v227
    %v229 = vrot.slane %v66, %v228
    %v230 = vlaneseq
    %v231 = vshrl.u32 %v230, 7
    %v232 = vsub.s32 1, %v231
    %v233 = vrot.slane %v66, %v232
    %v236 = vadd.f32 %v221, %v229
    %v237 = vadd.f32 %v223, %v233
    %v238 = vxor.u32 %v236, 2147483648
    %v239 = vmul.f32 %v238, 1.442695
    %v240 = vpow.pop %v239
    %v241 = vadd.f32 %v240, 1.0
    %v242 = vrcp.pop %v241
    %v243 = vmul.f32 1.0, %v242
    %v244 = vtanh.pop %v237
    %v245 = vxor.u32 %v237, 2147483648
    %v246 = vmul.f32 %v245, 1.442695
    %v247 = vpow.pop %v246
    %v248 = vadd.f32 %v247, 1.0
    %v249 = vrcp.pop %v248
    %v250 = vmul.f32 1.0, %v249
    %252 = vrot.lane.b32.xlu0 %v68, 64
    %v253 = vpop.permute.xlu0 %252
    %v255 = vmul.f32 %v243, %v253
    %v256 = vmul.f32 %v243, %v244
    %258 = vrot.lane.b32.xlu0 %v256, 64
    %v259 = vpop.permute.xlu0 %258
    %v261 = vadd.f32 %v255, %v259
    %v262 = vtanh.pop %v261
    %v263 = vmul.f32 %v250, %v262
    %v266 = vunpack.c.l.s4 1966171168
    %v267 = vunpack.c.0.s8 %v266
    %v268 = vlaneseq
    %v269 = vshrl.u32 %v268, 7
    %v270 = vsub.s32 %v267, %v269
    %v271 = vrot.slane %v263, %v270
    %v272 = vcombine.high %v271, %v271
    %v274 = vunpack.c.l.s4 1966171168
    %v275 = vunpack.c.0.s8 %v274
    %v276 = vlaneseq
    %v277 = vshrl.u32 %v276, 7
    %v278 = vsub.s32 %v275, %v277
    %v279 = vrot.slane %v271, %v278
    %v281 = vunpack.c.l.s4 1966171168
    %v282 = vunpack.c.0.s8 %v281
    %v283 = vlaneseq
    %v284 = vshrl.u32 %v283, 7
    %v285 = vsub.s32 %v282, %v284
    %v286 = vrot.slane %v272, %v285
    %v287 = vlaneseq
    %v288 = vshrl.u32 %v287, 7
    %v289 = vsub.s32 0, %v288
    %v290 = vrot.slane %v279, %v289
    %v291 = vlaneseq
    %v292 = vshrl.u32 %v291, 7
    %v293 = vsub.s32 0, %v292
    %v294 = vrot.slane %v286, %v293
    %295 = vrot.lane.b32.xlu0 %v290, 64
    %v296 = vpop.permute.xlu0 %295
    %297 = vrot.lane.b32.xlu0 %v294, 64
    %v298 = vpop.permute.xlu0 %297
    %vm301 = vcmask 516096
    %302 = vst.msk [vmem:[#allocation2] sm:$0x1] %vm301, %v296
    %303 = vst.msk [vmem:[#allocation2 + $0x8] sm:$0x1] %vm301, %v298
    %v304 = vld [vmem:[%s0 + $0x1] sm:$0x1]
    %v305 = vld [vmem:[%s0 + $0x9] sm:$0x1]
    %306 = vrot.lane.b32.xlu0 %v263, 64
    %v307 = vpop.permute.xlu0 %306
    %v308 = vsel %vm71, %v307, 0
    %310 = vmatprep.subr.mxu0 %v51
    %311 = vmatpush1.msra.mxu0 %v50
    %312 = vmatprep.subr.mxu0 %v53
    %313 = vmatpush1.msra.mxu0 %v52
    %314 = vmatprep.subr.mxu0 %v55
    %315 = vmatpush1.msra.mxu0 %v54
    %316 = vmatprep.subr.mxu0 %v57
    %317 = vmatpush1.msra.mxu0 %v56
    %318 = vmatprep.subr.mxu0 %v59
    %319 = vmatpush1.msra.mxu0 %v58
    %320 = vmatprep.subr.mxu0 %v61
    %321 = vmatpush1.msra.mxu0 %v60
    %322 = vmatprep.subr.mxu0 %v63
    %323 = vmatpush1.msra.mxu0 %v62
    %324 = vmatprep.subr.mxu0 %v65
    %325 = vmatpush1.msra.mxu0 %v64
    %326 = vmatprep.subr.mxu0 0.0
    %327 = vmatpush1.msra.mxu0 0.0
    %328 = vmatprep.subr.mxu0 0.0
    %329 = vmatpush1.msra.mxu0 0.0
    %330 = vmatprep.subr.mxu0 0.0
    %331 = vmatpush1.msra.mxu0 0.0
    %332 = vmatprep.subr.mxu0 0.0
    %333 = vmatpush1.msra.mxu0 0.0
    %334 = vmatprep.subr.mxu0 0.0
    %335 = vmatpush1.msra.mxu0 0.0
    %336 = vmatprep.subr.mxu0 0.0
    %337 = vmatpush1.msra.mxu0 0.0
    %338 = vmatprep.subr.mxu0 0.0
    %339 = vmatpush1.msra.mxu0 0.0
    %340 = vmatprep.subr.mxu0 0.0
    %341 = vmatpush1.msra.mxu0 0.0
    %342 = vmatprep.subr.mxu0 0.0
    %343 = vmatpush1.msra.mxu0 0.0
    %344 = vmatprep.subr.mxu0 0.0
    %345 = vmatpush1.msra.mxu0 0.0
    %346 = vmatprep.subr.mxu0 0.0
    %347 = vmatpush1.msra.mxu0 0.0
    %348 = vmatprep.subr.mxu0 0.0
    %349 = vmatpush1.msra.mxu0 0.0
    %350 = vmatprep.subr.mxu0 0.0
    %351 = vmatpush1.msra.mxu0 0.0
    %352 = vmatprep.subr.mxu0 0.0
    %353 = vmatpush1.msra.mxu0 0.0
    %354 = vmatprep.subr.mxu0 0.0
    %355 = vmatpush1.msra.mxu0 0.0
    %356 = vmatprep.subr.mxu0 0.0
    %357 = vmatpush1.msra.mxu0 0.0
    %358 = vmatprep.subr.mxu0 0.0
    %359 = vmatpush1.msra.mxu0 0.0
    %360 = vmatprep.subr.mxu0 0.0
    %361 = vmatpush1.msra.mxu0 0.0
    %362 = vmatprep.subr.mxu0 0.0
    %363 = vmatpush1.msra.mxu0 0.0
    %364 = vmatprep.subr.mxu0 0.0
    %365 = vmatpush1.msra.mxu0 0.0
    %366 = vmatprep.subr.mxu0 0.0
    %367 = vmatpush1.msra.mxu0 0.0
    %368 = vmatprep.subr.mxu0 0.0
    %369 = vmatpush1.msra.mxu0 0.0
    %370 = vmatprep.subr.mxu0 0.0
    %371 = vmatpush1.msra.mxu0 0.0
    %372 = vmatprep.subr.mxu0 0.0
    %373 = vmatpush1.msra.mxu0 0.0
    %374 = vmatprep.mubr.f32.mxu0 0.0
    %375 = vmatmul.mubr.f32.gmra.mrb[0].mxu0 %v308
    %v376 = vpop.f32.mrb[0].mxu0
    %v377 = vadd.f32 0.0, %v376
    %v378 = vpop.f32.mrb[0].mxu0
    %v379 = vadd.f32 0.0, %v378
    %380 = vdwg.mxu0
    %v383 = vrot.slane %v305, 7
    %v384 = vsel %vm149, %v383, %v304
    %v385 = vsel %vm151, %v384, 0
    %387 = vmatprep.subr.mxu0 %v47
    %388 = vmatpush1.msra.mxu0 %v46
    %389 = vmatprep.subr.mxu0 %v49
    %390 = vmatpush1.msra.mxu0 %v48
    %391 = vmatprep.subr.mxu0 0.0
    %392 = vmatpush1.msra.mxu0 0.0
    %393 = vmatprep.subr.mxu0 0.0
    %394 = vmatpush1.msra.mxu0 0.0
    %395 = vmatprep.subr.mxu0 0.0
    %396 = vmatpush1.msra.mxu0 0.0
    %397 = vmatprep.subr.mxu0 0.0
    %398 = vmatpush1.msra.mxu0 0.0
    %399 = vmatprep.subr.mxu0 0.0
    %400 = vmatpush1.msra.mxu0 0.0
    %401 = vmatprep.subr.mxu0 0.0
    %402 = vmatpush1.msra.mxu0 0.0
    %403 = vmatprep.subr.mxu0 0.0
    %404 = vmatpush1.msra.mxu0 0.0
    %405 = vmatprep.subr.mxu0 0.0
    %406 = vmatpush1.msra.mxu0 0.0
    %407 = vmatprep.subr.mxu0 0.0
    %408 = vmatpush1.msra.mxu0 0.0
    %409 = vmatprep.subr.mxu0 0.0
    %410 = vmatpush1.msra.mxu0 0.0
    %411 = vmatprep.subr.mxu0 0.0
    %412 = vmatpush1.msra.mxu0 0.0
    %413 = vmatprep.subr.mxu0 0.0
    %414 = vmatpush1.msra.mxu0 0.0
    %415 = vmatprep.subr.mxu0 0.0
    %416 = vmatpush1.msra.mxu0 0.0
    %417 = vmatprep.subr.mxu0 0.0
    %418 = vmatpush1.msra.mxu0 0.0
    %419 = vmatprep.subr.mxu0 0.0
    %420 = vmatpush1.msra.mxu0 0.0
    %421 = vmatprep.subr.mxu0 0.0
    %422 = vmatpush1.msra.mxu0 0.0
    %423 = vmatprep.subr.mxu0 0.0
    %424 = vmatpush1.msra.mxu0 0.0
    %425 = vmatprep.subr.mxu0 0.0
    %426 = vmatpush1.msra.mxu0 0.0
    %427 = vmatprep.subr.mxu0 0.0
    %428 = vmatpush1.msra.mxu0 0.0
    %429 = vmatprep.subr.mxu0 0.0
    %430 = vmatpush1.msra.mxu0 0.0
    %431 = vmatprep.subr.mxu0 0.0
    %432 = vmatpush1.msra.mxu0 0.0
    %433 = vmatprep.subr.mxu0 0.0
    %434 = vmatpush1.msra.mxu0 0.0
    %435 = vmatprep.subr.mxu0 0.0
    %436 = vmatpush1.msra.mxu0 0.0
    %437 = vmatprep.subr.mxu0 0.0
    %438 = vmatpush1.msra.mxu0 0.0
    %439 = vmatprep.subr.mxu0 0.0
    %440 = vmatpush1.msra.mxu0 0.0
    %441 = vmatprep.subr.mxu0 0.0
    %442 = vmatpush1.msra.mxu0 0.0
    %443 = vmatprep.subr.mxu0 0.0
    %444 = vmatpush1.msra.mxu0 0.0
    %445 = vmatprep.subr.mxu0 0.0
    %446 = vmatpush1.msra.mxu0 0.0
    %447 = vmatprep.subr.mxu0 0.0
    %448 = vmatpush1.msra.mxu0 0.0
    %449 = vmatprep.subr.mxu0 0.0
    %450 = vmatpush1.msra.mxu0 0.0
    %451 = vmatprep.mubr.f32.mxu0 0.0
    %452 = vmatmul.mubr.f32.gmra.mrb[0].mxu0 %v385
    %v453 = vpop.f32.mrb[0].mxu0
    %v454 = vadd.f32 %v377, %v453
    %v455 = vpop.f32.mrb[0].mxu0
    %v456 = vadd.f32 %v379, %v455
    %457 = vdwg.mxu0
    %v458 = vadd.f32 %v454, %v229
    %v459 = vadd.f32 %v456, %v233
    %v460 = vxor.u32 %v458, 2147483648
    %v461 = vmul.f32 %v460, 1.442695
    %v462 = vpow.pop %v461
    %v463 = vadd.f32 %v462, 1.0
    %v464 = vrcp.pop %v463
    %v465 = vmul.f32 1.0, %v464
    %v466 = vtanh.pop %v459
    %v467 = vxor.u32 %v459, 2147483648
    %v468 = vmul.f32 %v467, 1.442695
    %v469 = vpow.pop %v468
    %v470 = vadd.f32 %v469, 1.0
    %v471 = vrcp.pop %v470
    %v472 = vmul.f32 1.0, %v471
    %v473 = vmul.f32 %v465, %v261
    %v474 = vmul.f32 %v465, %v466
    %476 = vrot.lane.b32.xlu0 %v474, 64
    %v477 = vpop.permute.xlu0 %476
    %v479 = vadd.f32 %v473, %v477
    %v480 = vtanh.pop %v479
    %v481 = vmul.f32 %v472, %v480
    %v484 = vunpack.c.l.s4 1966171168
    %v485 = vunpack.c.0.s8 %v484
    %v486 = vlaneseq
    %v487 = vshrl.u32 %v486, 7
    %v488 = vsub.s32 %v485, %v487
    %v489 = vrot.slane %v481, %v488
    %v490 = vcombine.high %v489, %v489
    %v492 = vunpack.c.l.s4 1966171168
    %v493 = vunpack.c.0.s8 %v492
    %v494 = vlaneseq
    %v495 = vshrl.u32 %v494, 7
    %v496 = vsub.s32 %v493, %v495
    %v497 = vrot.slane %v489, %v496
    %v499 = vunpack.c.l.s4 1966171168
    %v500 = vunpack.c.0.s8 %v499
    %v501 = vlaneseq
    %v502 = vshrl.u32 %v501, 7
    %v503 = vsub.s32 %v500, %v502
    %v504 = vrot.slane %v490, %v503
    %v505 = vlaneseq
    %v506 = vshrl.u32 %v505, 7
    %v507 = vsub.s32 0, %v506
    %v508 = vrot.slane %v497, %v507
    %v509 = vlaneseq
    %v510 = vshrl.u32 %v509, 7
    %v511 = vsub.s32 0, %v510
    %v512 = vrot.slane %v504, %v511
    %513 = vrot.lane.b32.xlu0 %v508, 64
    %v514 = vpop.permute.xlu0 %513
    %515 = vrot.lane.b32.xlu0 %v512, 64
    %v516 = vpop.permute.xlu0 %515
    %519 = vst.msk [vmem:[#allocation2 + $0x1] sm:$0x1] %vm301, %v514
    %520 = vst.msk [vmem:[#allocation2 + $0x9] sm:$0x1] %vm301, %v516
    %v521 = vld [vmem:[%s0 + $0x2] sm:$0x1]
    %v522 = vld [vmem:[%s0 + $0xa] sm:$0x1]
    %523 = vrot.lane.b32.xlu0 %v481, 64
    %v524 = vpop.permute.xlu0 %523
    %v525 = vsel %vm71, %v524, 0
    %527 = vmatprep.subr.mxu0 %v51
    %528 = vmatpush1.msra.mxu0 %v50
    %529 = vmatprep.subr.mxu0 %v53
    %530 = vmatpush1.msra.mxu0 %v52
    %531 = vmatprep.subr.mxu0 %v55
    %532 = vmatpush1.msra.mxu0 %v54
    %533 = vmatprep.subr.mxu0 %v57
    %534 = vmatpush1.msra.mxu0 %v56
    %535 = vmatprep.subr.mxu0 %v59
    %536 = vmatpush1.msra.mxu0 %v58
    %537 = vmatprep.subr.mxu0 %v61
    %538 = vmatpush1.msra.mxu0 %v60
    %539 = vmatprep.subr.mxu0 %v63
    %540 = vmatpush1.msra.mxu0 %v62
    %541 = vmatprep.subr.mxu0 %v65
    %542 = vmatpush1.msra.mxu0 %v64
    %543 = vmatprep.subr.mxu0 0.0
    %544 = vmatpush1.msra.mxu0 0.0
    %545 = vmatprep.subr.mxu0 0.0
    %546 = vmatpush1.msra.mxu0 0.0
    %547 = vmatprep.subr.mxu0 0.0
    %548 = vmatpush1.msra.mxu0 0.0
    %549 = vmatprep.subr.mxu0 0.0
    %550 = vmatpush1.msra.mxu0 0.0
    %551 = vmatprep.subr.mxu0 0.0
    %552 = vmatpush1.msra.mxu0 0.0
    %553 = vmatprep.subr.mxu0 0.0
    %554 = vmatpush1.msra.mxu0 0.0
    %555 = vmatprep.subr.mxu0 0.0
    %556 = vmatpush1.msra.mxu0 0.0
    %557 = vmatprep.subr.mxu0 0.0
    %558 = vmatpush1.msra.mxu0 0.0
    %559 = vmatprep.subr.mxu0 0.0
    %560 = vmatpush1.msra.mxu0 0.0
    %561 = vmatprep.subr.mxu0 0.0
    %562 = vmatpush1.msra.mxu0 0.0
    %563 = vmatprep.subr.mxu0 0.0
    %564 = vmatpush1.msra.mxu0 0.0
    %565 = vmatprep.subr.mxu0 0.0
    %566 = vmatpush1.msra.mxu0 0.0
    %567 = vmatprep.subr.mxu0 0.0
    %568 = vmatpush1.msra.mxu0 0.0
    %569 = vmatprep.subr.mxu0 0.0
    %570 = vmatpush1.msra.mxu0 0.0
    %571 = vmatprep.subr.mxu0 0.0
    %572 = vmatpush1.msra.mxu0 0.0
    %573 = vmatprep.subr.mxu0 0.0
    %574 = vmatpush1.msra.mxu0 0.0
    %575 = vmatprep.subr.mxu0 0.0
    %576 = vmatpush1.msra.mxu0 0.0
    %577 = vmatprep.subr.mxu0 0.0
    %578 = vmatpush1.msra.mxu0 0.0
    %579 = vmatprep.subr.mxu0 0.0
    %580 = vmatpush1.msra.mxu0 0.0
    %581 = vmatprep.subr.mxu0 0.0
    %582 = vmatpush1.msra.mxu0 0.0
    %583 = vmatprep.subr.mxu0 0.0
    %584 = vmatpush1.msra.mxu0 0.0
    %585 = vmatprep.subr.mxu0 0.0
    %586 = vmatpush1.msra.mxu0 0.0
    %587 = vmatprep.subr.mxu0 0.0
    %588 = vmatpush1.msra.mxu0 0.0
    %589 = vmatprep.subr.mxu0 0.0
    %590 = vmatpush1.msra.mxu0 0.0
    %591 = vmatprep.mubr.f32.mxu0 0.0
    %592 = vmatmul.mubr.f32.gmra.mrb[0].mxu0 %v525
    %v593 = vpop.f32.mrb[0].mxu0
    %v594 = vadd.f32 0.0, %v593
    %v595 = vpop.f32.mrb[0].mxu0
    %v596 = vadd.f32 0.0, %v595
    %597 = vdwg.mxu0
    %v600 = vrot.slane %v522, 7
    %v601 = vsel %vm149, %v600, %v521
    %v602 = vsel %vm151, %v601, 0
    %604 = vmatprep.subr.mxu0 %v47
    %605 = vmatpush1.msra.mxu0 %v46
    %606 = vmatprep.subr.mxu0 %v49
    %607 = vmatpush1.msra.mxu0 %v48
    %608 = vmatprep.subr.mxu0 0.0
    %609 = vmatpush1.msra.mxu0 0.0
    %610 = vmatprep.subr.mxu0 0.0
    %611 = vmatpush1.msra.mxu0 0.0
    %612 = vmatprep.subr.mxu0 0.0
    %613 = vmatpush1.msra.mxu0 0.0
    %614 = vmatprep.subr.mxu0 0.0
    %615 = vmatpush1.msra.mxu0 0.0
    %616 = vmatprep.subr.mxu0 0.0
    %617 = vmatpush1.msra.mxu0 0.0
    %618 = vmatprep.subr.mxu0 0.0
    %619 = vmatpush1.msra.mxu0 0.0
    %620 = vmatprep.subr.mxu0 0.0
    %621 = vmatpush1.msra.mxu0 0.0
    %622 = vmatprep.subr.mxu0 0.0
    %623 = vmatpush1.msra.mxu0 0.0
    %624 = vmatprep.subr.mxu0 0.0
    %625 = vmatpush1.msra.mxu0 0.0
    %626 = vmatprep.subr.mxu0 0.0
    %627 = vmatpush1.msra.mxu0 0.0
    %628 = vmatprep.subr.mxu0 0.0
    %629 = vmatpush1.msra.mxu0 0.0
    %630 = vmatprep.subr.mxu0 0.0
    %631 = vmatpush1.msra.mxu0 0.0
    %632 = vmatprep.subr.mxu0 0.0
    %633 = vmatpush1.msra.mxu0 0.0
    %634 = vmatprep.subr.mxu0 0.0
    %635 = vmatpush1.msra.mxu0 0.0
    %636 = vmatprep.subr.mxu0 0.0
    %637 = vmatpush1.msra.mxu0 0.0
    %638 = vmatprep.subr.mxu0 0.0
    %639 = vmatpush1.msra.mxu0 0.0
    %640 = vmatprep.subr.mxu0 0.0
    %641 = vmatpush1.msra.mxu0 0.0
    %642 = vmatprep.subr.mxu0 0.0
    %643 = vmatpush1.msra.mxu0 0.0
    %644 = vmatprep.subr.mxu0 0.0
    %645 = vmatpush1.msra.mxu0 0.0
    %646 = vmatprep.subr.mxu0 0.0
    %647 = vmatpush1.msra.mxu0 0.0
    %648 = vmatprep.subr.mxu0 0.0
    %649 = vmatpush1.msra.mxu0 0.0
    %650 = vmatprep.subr.mxu0 0.0
    %651 = vmatpush1.msra.mxu0 0.0
    %652 = vmatprep.subr.mxu0 0.0
    %653 = vmatpush1.msra.mxu0 0.0
    %654 = vmatprep.subr.mxu0 0.0
    %655 = vmatpush1.msra.mxu0 0.0
    %656 = vmatprep.subr.mxu0 0.0
    %657 = vmatpush1.msra.mxu0 0.0
    %658 = vmatprep.subr.mxu0 0.0
    %659 = vmatpush1.msra.mxu0 0.0
    %660 = vmatprep.subr.mxu0 0.0
    %661 = vmatpush1.msra.mxu0 0.0
    %662 = vmatprep.subr.mxu0 0.0
    %663 = vmatpush1.msra.mxu0 0.0
    %664 = vmatprep.subr.mxu0 0.0
    %665 = vmatpush1.msra.mxu0 0.0
    %666 = vmatprep.subr.mxu0 0.0
    %667 = vmatpush1.msra.mxu0 0.0
    %668 = vmatprep.mubr.f32.mxu0 0.0
    %669 = vmatmul.mubr.f32.gmra.mrb[0].mxu0 %v602
    %v670 = vpop.f32.mrb[0].mxu0
    %v671 = vadd.f32 %v594, %v670
    %v672 = vpop.f32.mrb[0].mxu0
    %v673 = vadd.f32 %v596, %v672
    %674 = vdwg.mxu0
    %v675 = vadd.f32 %v671, %v229
    %v676 = vadd.f32 %v673, %v233
    %v677 = vxor.u32 %v675, 2147483648
    %v678 = vmul.f32 %v677, 1.442695
    %v679 = vpow.pop %v678
    %v680 = vadd.f32 %v679, 1.0
    %v681 = vrcp.pop %v680
    %v682 = vmul.f32 1.0, %v681
    %v683 = vtanh.pop %v676
    %v684 = vxor.u32 %v676, 2147483648
    %v685 = vmul.f32 %v684, 1.442695
    %v686 = vpow.pop %v685
    %v687 = vadd.f32 %v686, 1.0
    %v688 = vrcp.pop %v687
    %v689 = vmul.f32 1.0, %v688
    %v690 = vmul.f32 %v682, %v479
    %v691 = vmul.f32 %v682, %v683
    %693 = vrot.lane.b32.xlu0 %v691, 64
    %v694 = vpop.permute.xlu0 %693
    %v696 = vadd.f32 %v690, %v694
    %v697 = vtanh.pop %v696
    %v698 = vmul.f32 %v689, %v697
    %v701 = vunpack.c.l.s4 1966171168
    %v702 = vunpack.c.0.s8 %v701
    %v703 = vlaneseq
    %v704 = vshrl.u32 %v703, 7
    %v705 = vsub.s32 %v702, %v704
    %v706 = vrot.slane %v698, %v705
    %v707 = vcombine.high %v706, %v706
    %v709 = vunpack.c.l.s4 1966171168
    %v710 = vunpack.c.0.s8 %v709
    %v711 = vlaneseq
    %v712 = vshrl.u32 %v711, 7
    %v713 = vsub.s32 %v710, %v712
    %v714 = vrot.slane %v706, %v713
    %v716 = vunpack.c.l.s4 1966171168
    %v717 = vunpack.c.0.s8 %v716
    %v718 = vlaneseq
    %v719 = vshrl.u32 %v718, 7
    %v720 = vsub.s32 %v717, %v719
    %v721 = vrot.slane %v707, %v720
    %v722 = vlaneseq
    %v723 = vshrl.u32 %v722, 7
    %v724 = vsub.s32 0, %v723
    %v725 = vrot.slane %v714, %v724
    %v726 = vlaneseq
    %v727 = vshrl.u32 %v726, 7
    %v728 = vsub.s32 0, %v727
    %v729 = vrot.slane %v721, %v728
    %730 = vrot.lane.b32.xlu0 %v725, 64
    %v731 = vpop.permute.xlu0 %730
    %732 = vrot.lane.b32.xlu0 %v729, 64
    %v733 = vpop.permute.xlu0 %732
    %736 = vst.msk [vmem:[#allocation2 + $0x2] sm:$0x1] %vm301, %v731
    %737 = vst.msk [vmem:[#allocation2 + $0xa] sm:$0x1] %vm301, %v733
    %v738 = vld [vmem:[%s0 + $0x3] sm:$0x1]
    %v739 = vld [vmem:[%s0 + $0xb] sm:$0x1]
    %740 = vrot.lane.b32.xlu0 %v698, 64
    %v741 = vpop.permute.xlu0 %740
    %v742 = vsel %vm71, %v741, 0
    %744 = vmatprep.subr.mxu0 %v51
    %745 = vmatpush1.msra.mxu0 %v50
    %746 = vmatprep.subr.mxu0 %v53
    %747 = vmatpush1.msra.mxu0 %v52
    %748 = vmatprep.subr.mxu0 %v55
    %749 = vmatpush1.msra.mxu0 %v54
    %750 = vmatprep.subr.mxu0 %v57
    %751 = vmatpush1.msra.mxu0 %v56
    %752 = vmatprep.subr.mxu0 %v59
    %753 = vmatpush1.msra.mxu0 %v58
    %754 = vmatprep.subr.mxu0 %v61
    %755 = vmatpush1.msra.mxu0 %v60
    %756 = vmatprep.subr.mxu0 %v63
    %757 = vmatpush1.msra.mxu0 %v62
    %758 = vmatprep.subr.mxu0 %v65
    %759 = vmatpush1.msra.mxu0 %v64
    %760 = vmatprep.subr.mxu0 0.0
    %761 = vmatpush1.msra.mxu0 0.0
    %762 = vmatprep.subr.mxu0 0.0
    %763 = vmatpush1.msra.mxu0 0.0
    %764 = vmatprep.subr.mxu0 0.0
    %765 = vmatpush1.msra.mxu0 0.0
    %766 = vmatprep.subr.mxu0 0.0
    %767 = vmatpush1.msra.mxu0 0.0
    %768 = vmatprep.subr.mxu0 0.0
    %769 = vmatpush1.msra.mxu0 0.0
    %770 = vmatprep.subr.mxu0 0.0
    %771 = vmatpush1.msra.mxu0 0.0
    %772 = vmatprep.subr.mxu0 0.0
    %773 = vmatpush1.msra.mxu0 0.0
    %774 = vmatprep.subr.mxu0 0.0
    %775 = vmatpush1.msra.mxu0 0.0
    %776 = vmatprep.subr.mxu0 0.0
    %777 = vmatpush1.msra.mxu0 0.0
    %778 = vmatprep.subr.mxu0 0.0
    %779 = vmatpush1.msra.mxu0 0.0
    %780 = vmatprep.subr.mxu0 0.0
    %781 = vmatpush1.msra.mxu0 0.0
    %782 = vmatprep.subr.mxu0 0.0
    %783 = vmatpush1.msra.mxu0 0.0
    %784 = vmatprep.subr.mxu0 0.0
    %785 = vmatpush1.msra.mxu0 0.0
    %786 = vmatprep.subr.mxu0 0.0
    %787 = vmatpush1.msra.mxu0 0.0
    %788 = vmatprep.subr.mxu0 0.0
    %789 = vmatpush1.msra.mxu0 0.0
    %790 = vmatprep.subr.mxu0 0.0
    %791 = vmatpush1.msra.mxu0 0.0
    %792 = vmatprep.subr.mxu0 0.0
    %793 = vmatpush1.msra.mxu0 0.0
    %794 = vmatprep.subr.mxu0 0.0
    %795 = vmatpush1.msra.mxu0 0.0
    %796 = vmatprep.subr.mxu0 0.0
    %797 = vmatpush1.msra.mxu0 0.0
    %798 = vmatprep.subr.mxu0 0.0
    %799 = vmatpush1.msra.mxu0 0.0
    %800 = vmatprep.subr.mxu0 0.0
    %801 = vmatpush1.msra.mxu0 0.0
    %802 = vmatprep.subr.mxu0 0.0
    %803 = vmatpush1.msra.mxu0 0.0
    %804 = vmatprep.subr.mxu0 0.0
    %805 = vmatpush1.msra.mxu0 0.0
    %806 = vmatprep.subr.mxu0 0.0
    %807 = vmatpush1.msra.mxu0 0.0
    %808 = vmatprep.mubr.f32.mxu0 0.0
    %809 = vmatmul.mubr.f32.gmra.mrb[0].mxu0 %v742
    %v810 = vpop.f32.mrb[0].mxu0
    %v811 = vadd.f32 0.0, %v810
    %v812 = vpop.f32.mrb[0].mxu0
    %v813 = vadd.f32 0.0, %v812
    %814 = vdwg.mxu0
    %v817 = vrot.slane %v739, 7
    %v818 = vsel %vm149, %v817, %v738
    %v819 = vsel %vm151, %v818, 0
    %821 = vmatprep.subr.mxu0 %v47
    %822 = vmatpush1.msra.mxu0 %v46
    %823 = vmatprep.subr.mxu0 %v49
    %824 = vmatpush1.msra.mxu0 %v48
    %825 = vmatprep.subr.mxu0 0.0
    %826 = vmatpush1.msra.mxu0 0.0
    %827 = vmatprep.subr.mxu0 0.0
    %828 = vmatpush1.msra.mxu0 0.0
    %829 = vmatprep.subr.mxu0 0.0
    %830 = vmatpush1.msra.mxu0 0.0
    %831 = vmatprep.subr.mxu0 0.0
    %832 = vmatpush1.msra.mxu0 0.0
    %833 = vmatprep.subr.mxu0 0.0
    %834 = vmatpush1.msra.mxu0 0.0
    %835 = vmatprep.subr.mxu0 0.0
    %836 = vmatpush1.msra.mxu0 0.0
    %837 = vmatprep.subr.mxu0 0.0
    %838 = vmatpush1.msra.mxu0 0.0
    %839 = vmatprep.subr.mxu0 0.0
    %840 = vmatpush1.msra.mxu0 0.0
    %841 = vmatprep.subr.mxu0 0.0
    %842 = vmatpush1.msra.mxu0 0.0
    %843 = vmatprep.subr.mxu0 0.0
    %844 = vmatpush1.msra.mxu0 0.0
    %845 = vmatprep.subr.mxu0 0.0
    %846 = vmatpush1.msra.mxu0 0.0
    %847 = vmatprep.subr.mxu0 0.0
    %848 = vmatpush1.msra.mxu0 0.0
    %849 = vmatprep.subr.mxu0 0.0
    %850 = vmatpush1.msra.mxu0 0.0
    %851 = vmatprep.subr.mxu0 0.0
    %852 = vmatpush1.msra.mxu0 0.0
    %853 = vmatprep.subr.mxu0 0.0
    %854 = vmatpush1.msra.mxu0 0.0
    %855 = vmatprep.subr.mxu0 0.0
    %856 = vmatpush1.msra.mxu0 0.0
    %857 = vmatprep.subr.mxu0 0.0
    %858 = vmatpush1.msra.mxu0 0.0
    %859 = vmatprep.subr.mxu0 0.0
    %860 = vmatpush1.msra.mxu0 0.0
    %861 = vmatprep.subr.mxu0 0.0
    %862 = vmatpush1.msra.mxu0 0.0
    %863 = vmatprep.subr.mxu0 0.0
    %864 = vmatpush1.msra.mxu0 0.0
    %865 = vmatprep.subr.mxu0 0.0
    %866 = vmatpush1.msra.mxu0 0.0
    %867 = vmatprep.subr.mxu0 0.0
    %868 = vmatpush1.msra.mxu0 0.0
    %869 = vmatprep.subr.mxu0 0.0
    %870 = vmatpush1.msra.mxu0 0.0
    %871 = vmatprep.subr.mxu0 0.0
    %872 = vmatpush1.msra.mxu0 0.0
    %873 = vmatprep.subr.mxu0 0.0
    %874 = vmatpush1.msra.mxu0 0.0
    %875 = vmatprep.subr.mxu0 0.0
    %876 = vmatpush1.msra.mxu0 0.0
    %877 = vmatprep.subr.mxu0 0.0
    %878 = vmatpush1.msra.mxu0 0.0
    %879 = vmatprep.subr.mxu0 0.0
    %880 = vmatpush1.msra.mxu0 0.0
    %881 = vmatprep.subr.mxu0 0.0
    %882 = vmatpush1.msra.mxu0 0.0
    %883 = vmatprep.subr.mxu0 0.0
    %884 = vmatpush1.msra.mxu0 0.0
    %885 = vmatprep.mubr.f32.mxu0 0.0
    %886 = vmatmul.mubr.f32.gmra.mrb[0].mxu0 %v819
    %v887 = vpop.f32.mrb[0].mxu0
    %v888 = vadd.f32 %v811, %v887
    %v889 = vpop.f32.mrb[0].mxu0
    %v890 = vadd.f32 %v813, %v889
    %891 = vdwg.mxu0
    %v892 = vadd.f32 %v888, %v229
    %v893 = vadd.f32 %v890, %v233
    %v894 = vxor.u32 %v892, 2147483648
    %v895 = vmul.f32 %v894, 1.442695
    %v896 = vpow.pop %v895
    %v897 = vadd.f32 %v896, 1.0
    %v898 = vrcp.pop %v897
    %v899 = vmul.f32 1.0, %v898
    %v900 = vtanh.pop %v893
    %v901 = vxor.u32 %v893, 2147483648
    %v902 = vmul.f32 %v901, 1.442695
    %v903 = vpow.pop %v902
    %v904 = vadd.f32 %v903, 1.0
    %v905 = vrcp.pop %v904
    %v906 = vmul.f32 1.0, %v905
    %v907 = vmul.f32 %v899, %v696
    %v908 = vmul.f32 %v899, %v900
    %910 = vrot.lane.b32.xlu0 %v908, 64
    %v911 = vpop.permute.xlu0 %910
    %v913 = vadd.f32 %v907, %v911
    %v914 = vtanh.pop %v913
    %v915 = vmul.f32 %v906, %v914
    %v918 = vunpack.c.l.s4 1966171168
    %v919 = vunpack.c.0.s8 %v918
    %v920 = vlaneseq
    %v921 = vshrl.u32 %v920, 7
    %v922 = vsub.s32 %v919, %v921
    %v923 = vrot.slane %v915, %v922
    %v924 = vcombine.high %v923, %v923
    %v926 = vunpack.c.l.s4 1966171168
    %v927 = vunpack.c.0.s8 %v926
    %v928 = vlaneseq
    %v929 = vshrl.u32 %v928, 7
    %v930 = vsub.s32 %v927, %v929
    %v931 = vrot.slane %v923, %v930
    %v933 = vunpack.c.l.s4 1966171168
    %v934 = vunpack.c.0.s8 %v933
    %v935 = vlaneseq
    %v936 = vshrl.u32 %v935, 7
    %v937 = vsub.s32 %v934, %v936
    %v938 = vrot.slane %v924, %v937
    %v939 = vlaneseq
    %v940 = vshrl.u32 %v939, 7
    %v941 = vsub.s32 0, %v940
    %v942 = vrot.slane %v931, %v941
    %v943 = vlaneseq
    %v944 = vshrl.u32 %v943, 7
    %v945 = vsub.s32 0, %v944
    %v946 = vrot.slane %v938, %v945
    %947 = vrot.lane.b32.xlu0 %v942, 64
    %v948 = vpop.permute.xlu0 %947
    %949 = vrot.lane.b32.xlu0 %v946, 64
    %v950 = vpop.permute.xlu0 %949
    %953 = vst.msk [vmem:[#allocation2 + $0x3] sm:$0x1] %vm301, %v948
    %954 = vst.msk [vmem:[#allocation2 + $0xb] sm:$0x1] %vm301, %v950
    %v955 = vld [vmem:[%s0 + $0x4] sm:$0x1]
    %v956 = vld [vmem:[%s0 + $0xc] sm:$0x1]
    %957 = vrot.lane.b32.xlu0 %v915, 64
    %v958 = vpop.permute.xlu0 %957
    %v959 = vsel %vm71, %v958, 0
    %961 = vmatprep.subr.mxu0 %v51
    %962 = vmatpush1.msra.mxu0 %v50
    %963 = vmatprep.subr.mxu0 %v53
    %964 = vmatpush1.msra.mxu0 %v52
    %965 = vmatprep.subr.mxu0 %v55
    %966 = vmatpush1.msra.mxu0 %v54
    %967 = vmatprep.subr.mxu0 %v57
    %968 = vmatpush1.msra.mxu0 %v56
    %969 = vmatprep.subr.mxu0 %v59
    %970 = vmatpush1.msra.mxu0 %v58
    %971 = vmatprep.subr.mxu0 %v61
    %972 = vmatpush1.msra.mxu0 %v60
    %973 = vmatprep.subr.mxu0 %v63
    %974 = vmatpush1.msra.mxu0 %v62
    %975 = vmatprep.subr.mxu0 %v65
    %976 = vmatpush1.msra.mxu0 %v64
    %977 = vmatprep.subr.mxu0 0.0
    %978 = vmatpush1.msra.mxu0 0.0
    %979 = vmatprep.subr.mxu0 0.0
    %980 = vmatpush1.msra.mxu0 0.0
    %981 = vmatprep.subr.mxu0 0.0
    %982 = vmatpush1.msra.mxu0 0.0
    %983 = vmatprep.subr.mxu0 0.0
    %984 = vmatpush1.msra.mxu0 0.0
    %985 = vmatprep.subr.mxu0 0.0
    %986 = vmatpush1.msra.mxu0 0.0
    %987 = vmatprep.subr.mxu0 0.0
    %988 = vmatpush1.msra.mxu0 0.0
    %989 = vmatprep.subr.mxu0 0.0
    %990 = vmatpush1.msra.mxu0 0.0
    %991 = vmatprep.subr.mxu0 0.0
    %992 = vmatpush1.msra.mxu0 0.0
    %993 = vmatprep.subr.mxu0 0.0
    %994 = vmatpush1.msra.mxu0 0.0
    %995 = vmatprep.subr.mxu0 0.0
    %996 = vmatpush1.msra.mxu0 0.0
    %997 = vmatprep.subr.mxu0 0.0
    %998 = vmatpush1.msra.mxu0 0.0
    %999 = vmatprep.subr.mxu0 0.0
    %1000 = vmatpush1.msra.mxu0 0.0
    %1001 = vmatprep.subr.mxu0 0.0
    %1002 = vmatpush1.msra.mxu0 0.0
    %1003 = vmatprep.subr.mxu0 0.0
    %1004 = vmatpush1.msra.mxu0 0.0
    %1005 = vmatprep.subr.mxu0 0.0
    %1006 = vmatpush1.msra.mxu0 0.0
    %1007 = vmatprep.subr.mxu0 0.0
    %1008 = vmatpush1.msra.mxu0 0.0
    %1009 = vmatprep.subr.mxu0 0.0
    %1010 = vmatpush1.msra.mxu0 0.0
    %1011 = vmatprep.subr.mxu0 0.0
    %1012 = vmatpush1.msra.mxu0 0.0
    %1013 = vmatprep.subr.mxu0 0.0
    %1014 = vmatpush1.msra.mxu0 0.0
    %1015 = vmatprep.subr.mxu0 0.0
    %1016 = vmatpush1.msra.mxu0 0.0
    %1017 = vmatprep.subr.mxu0 0.0
    %1018 = vmatpush1.msra.mxu0 0.0
    %1019 = vmatprep.subr.mxu0 0.0
    %1020 = vmatpush1.msra.mxu0 0.0
    %1021 = vmatprep.subr.mxu0 0.0
    %1022 = vmatpush1.msra.mxu0 0.0
    %1023 = vmatprep.subr.mxu0 0.0
    %1024 = vmatpush1.msra.mxu0 0.0
    %1025 = vmatprep.mubr.f32.mxu0 0.0
    %1026 = vmatmul.mubr.f32.gmra.mrb[0].mxu0 %v959
    %v1027 = vpop.f32.mrb[0].mxu0
    %v1028 = vadd.f32 0.0, %v1027
    %v1029 = vpop.f32.mrb[0].mxu0
    %v1030 = vadd.f32 0.0, %v1029
    %1031 = vdwg.mxu0
    %v1034 = vrot.slane %v956, 7
    %v1035 = vsel %vm149, %v1034, %v955
    %v1036 = vsel %vm151, %v1035, 0
    %1038 = vmatprep.subr.mxu0 %v47
    %1039 = vmatpush1.msra.mxu0 %v46
    %1040 = vmatprep.subr.mxu0 %v49
    %1041 = vmatpush1.msra.mxu0 %v48
    %1042 = vmatprep.subr.mxu0 0.0
    %1043 = vmatpush1.msra.mxu0 0.0
    %1044 = vmatprep.subr.mxu0 0.0
    %1045 = vmatpush1.msra.mxu0 0.0
    %1046 = vmatprep.subr.mxu0 0.0
    %1047 = vmatpush1.msra.mxu0 0.0
    %1048 = vmatprep.subr.mxu0 0.0
    %1049 = vmatpush1.msra.mxu0 0.0
    %1050 = vmatprep.subr.mxu0 0.0
    %1051 = vmatpush1.msra.mxu0 0.0
    %1052 = vmatprep.subr.mxu0 0.0
    %1053 = vmatpush1.msra.mxu0 0.0
    %1054 = vmatprep.subr.mxu0 0.0
    %1055 = vmatpush1.msra.mxu0 0.0
    %1056 = vmatprep.subr.mxu0 0.0
    %1057 = vmatpush1.msra.mxu0 0.0
    %1058 = vmatprep.subr.mxu0 0.0
    %1059 = vmatpush1.msra.mxu0 0.0
    %1060 = vmatprep.subr.mxu0 0.0
    %1061 = vmatpush1.msra.mxu0 0.0
    %1062 = vmatprep.subr.mxu0 0.0
    %1063 = vmatpush1.msra.mxu0 0.0
    %1064 = vmatprep.subr.mxu0 0.0
    %1065 = vmatpush1.msra.mxu0 0.0
    %1066 = vmatprep.subr.mxu0 0.0
    %1067 = vmatpush1.msra.mxu0 0.0
    %1068 = vmatprep.subr.mxu0 0.0
    %1069 = vmatpush1.msra.mxu0 0.0
    %1070 = vmatprep.subr.mxu0 0.0
    %1071 = vmatpush1.msra.mxu0 0.0
    %1072 = vmatprep.subr.mxu0 0.0
    %1073 = vmatpush1.msra.mxu0 0.0
    %1074 = vmatprep.subr.mxu0 0.0
    %1075 = vmatpush1.msra.mxu0 0.0
    %1076 = vmatprep.subr.mxu0 0.0
    %1077 = vmatpush1.msra.mxu0 0.0
    %1078 = vmatprep.subr.mxu0 0.0
    %1079 = vmatpush1.msra.mxu0 0.0
    %1080 = vmatprep.subr.mxu0 0.0
    %1081 = vmatpush1.msra.mxu0 0.0
    %1082 = vmatprep.subr.mxu0 0.0
    %1083 = vmatpush1.msra.mxu0 0.0
    %1084 = vmatprep.subr.mxu0 0.0
    %1085 = vmatpush1.msra.mxu0 0.0
    %1086 = vmatprep.subr.mxu0 0.0
    %1087 = vmatpush1.msra.mxu0 0.0
    %1088 = vmatprep.subr.mxu0 0.0
    %1089 = vmatpush1.msra.mxu0 0.0
    %1090 = vmatprep.subr.mxu0 0.0
    %1091 = vmatpush1.msra.mxu0 0.0
    %1092 = vmatprep.subr.mxu0 0.0
    %1093 = vmatpush1.msra.mxu0 0.0
    %1094 = vmatprep.subr.mxu0 0.0
    %1095 = vmatpush1.msra.mxu0 0.0
    %1096 = vmatprep.subr.mxu0 0.0
    %1097 = vmatpush1.msra.mxu0 0.0
    %1098 = vmatprep.subr.mxu0 0.0
    %1099 = vmatpush1.msra.mxu0 0.0
    %1100 = vmatprep.subr.mxu0 0.0
    %1101 = vmatpush1.msra.mxu0 0.0
    %1102 = vmatprep.mubr.f32.mxu0 0.0
    %1103 = vmatmul.mubr.f32.gmra.mrb[0].mxu0 %v1036
    %v1104 = vpop.f32.mrb[0].mxu0
    %v1105 = vadd.f32 %v1028, %v1104
    %v1106 = vpop.f32.mrb[0].mxu0
    %v1107 = vadd.f32 %v1030, %v1106
    %1108 = vdwg.mxu0
    %v1109 = vadd.f32 %v1105, %v229
    %v1110 = vadd.f32 %v1107, %v233
    %v1111 = vxor.u32 %v1109, 2147483648
    %v1112 = vmul.f32 %v1111, 1.442695
    %v1113 = vpow.pop %v1112
    %v1114 = vadd.f32 %v1113, 1.0
    %v1115 = vrcp.pop %v1114
    %v1116 = vmul.f32 1.0, %v1115
    %v1117 = vtanh.pop %v1110
    %v1118 = vxor.u32 %v1110, 2147483648
    %v1119 = vmul.f32 %v1118, 1.442695
    %v1120 = vpow.pop %v1119
    %v1121 = vadd.f32 %v1120, 1.0
    %v1122 = vrcp.pop %v1121
    %v1123 = vmul.f32 1.0, %v1122
    %v1124 = vmul.f32 %v1116, %v913
    %v1125 = vmul.f32 %v1116, %v1117
    %1127 = vrot.lane.b32.xlu0 %v1125, 64
    %v1128 = vpop.permute.xlu0 %1127
    %v1130 = vadd.f32 %v1124, %v1128
    %v1131 = vtanh.pop %v1130
    %v1132 = vmul.f32 %v1123, %v1131
    %v1135 = vunpack.c.l.s4 1966171168
    %v1136 = vunpack.c.0.s8 %v1135
    %v1137 = vlaneseq
    %v1138 = vshrl.u32 %v1137, 7
    %v1139 = vsub.s32 %v1136, %v1138
    %v1140 = vrot.slane %v1132, %v1139
    %v1141 = vcombine.high %v1140, %v1140
    %v1143 = vunpack.c.l.s4 1966171168
    %v1144 = vunpack.c.0.s8 %v1143
    %v1145 = vlaneseq
    %v1146 = vshrl.u32 %v1145, 7
    %v1147 = vsub.s32 %v1144, %v1146
    %v1148 = vrot.slane %v1140, %v1147
    %v1150 = vunpack.c.l.s4 1966171168
    %v1151 = vunpack.c.0.s8 %v1150
    %v1152 = vlaneseq
    %v1153 = vshrl.u32 %v1152, 7
    %v1154 = vsub.s32 %v1151, %v1153
    %v1155 = vrot.slane %v1141, %v1154
    %v1156 = vlaneseq
    %v1157 = vshrl.u32 %v1156, 7
    %v1158 = vsub.s32 0, %v1157
    %v1159 = vrot.slane %v1148, %v1158
    %v1160 = vlaneseq
    %v1161 = vshrl.u32 %v1160, 7
    %v1162 = vsub.s32 0, %v1161
    %v1163 = vrot.slane %v1155, %v1162
    %1164 = vrot.lane.b32.xlu0 %v1159, 64
    %v1165 = vpop.permute.xlu0 %1164
    %1166 = vrot.lane.b32.xlu0 %v1163, 64
    %v1167 = vpop.permute.xlu0 %1166
    %1170 = vst.msk [vmem:[#allocation2 + $0x4] sm:$0x1] %vm301, %v1165
    %1171 = vst.msk [vmem:[#allocation2 + $0xc] sm:$0x1] %vm301, %v1167
    %v1172 = vld [vmem:[%s0 + $0x5] sm:$0x1]
    %v1173 = vld [vmem:[%s0 + $0xd] sm:$0x1]
    %1174 = vrot.lane.b32.xlu0 %v1132, 64
    %v1175 = vpop.permute.xlu0 %1174
    %v1176 = vsel %vm71, %v1175, 0
    %1178 = vmatprep.subr.mxu0 %v51
    %1179 = vmatpush1.msra.mxu0 %v50
    %1180 = vmatprep.subr.mxu0 %v53
    %1181 = vmatpush1.msra.mxu0 %v52
    %1182 = vmatprep.subr.mxu0 %v55
    %1183 = vmatpush1.msra.mxu0 %v54
    %1184 = vmatprep.subr.mxu0 %v57
    %1185 = vmatpush1.msra.mxu0 %v56
    %1186 = vmatprep.subr.mxu0 %v59
    %1187 = vmatpush1.msra.mxu0 %v58
    %1188 = vmatprep.subr.mxu0 %v61
    %1189 = vmatpush1.msra.mxu0 %v60
    %1190 = vmatprep.subr.mxu0 %v63
    %1191 = vmatpush1.msra.mxu0 %v62
    %1192 = vmatprep.subr.mxu0 %v65
    %1193 = vmatpush1.msra.mxu0 %v64
    %1194 = vmatprep.subr.mxu0 0.0
    %1195 = vmatpush1.msra.mxu0 0.0
    %1196 = vmatprep.subr.mxu0 0.0
    %1197 = vmatpush1.msra.mxu0 0.0
    %1198 = vmatprep.subr.mxu0 0.0
    %1199 = vmatpush1.msra.mxu0 0.0
    %1200 = vmatprep.subr.mxu0 0.0
    %1201 = vmatpush1.msra.mxu0 0.0
    %1202 = vmatprep.subr.mxu0 0.0
    %1203 = vmatpush1.msra.mxu0 0.0
    %1204 = vmatprep.subr.mxu0 0.0
    %1205 = vmatpush1.msra.mxu0 0.0
    %1206 = vmatprep.subr.mxu0 0.0
    %1207 = vmatpush1.msra.mxu0 0.0
    %1208 = vmatprep.subr.mxu0 0.0
    %1209 = vmatpush1.msra.mxu0 0.0
    %1210 = vmatprep.subr.mxu0 0.0
    %1211 = vmatpush1.msra.mxu0 0.0
    %1212 = vmatprep.subr.mxu0 0.0
    %1213 = vmatpush1.msra.mxu0 0.0
    %1214 = vmatprep.subr.mxu0 0.0
    %1215 = vmatpush1.msra.mxu0 0.0
    %1216 = vmatprep.subr.mxu0 0.0
    %1217 = vmatpush1.msra.mxu0 0.0
    %1218 = vmatprep.subr.mxu0 0.0
    %1219 = vmatpush1.msra.mxu0 0.0
    %1220 = vmatprep.subr.mxu0 0.0
    %1221 = vmatpush1.msra.mxu0 0.0
    %1222 = vmatprep.subr.mxu0 0.0
    %1223 = vmatpush1.msra.mxu0 0.0
    %1224 = vmatprep.subr.mxu0 0.0
    %1225 = vmatpush1.msra.mxu0 0.0
    %1226 = vmatprep.subr.mxu0 0.0
    %1227 = vmatpush1.msra.mxu0 0.0
    %1228 = vmatprep.subr.mxu0 0.0
    %1229 = vmatpush1.msra.mxu0 0.0
    %1230 = vmatprep.subr.mxu0 0.0
    %1231 = vmatpush1.msra.mxu0 0.0
    %1232 = vmatprep.subr.mxu0 0.0
    %1233 = vmatpush1.msra.mxu0 0.0
    %1234 = vmatprep.subr.mxu0 0.0
    %1235 = vmatpush1.msra.mxu0 0.0
    %1236 = vmatprep.subr.mxu0 0.0
    %1237 = vmatpush1.msra.mxu0 0.0
    %1238 = vmatprep.subr.mxu0 0.0
    %1239 = vmatpush1.msra.mxu0 0.0
    %1240 = vmatprep.subr.mxu0 0.0
    %1241 = vmatpush1.msra.mxu0 0.0
    %1242 = vmatprep.mubr.f32.mxu0 0.0
    %1243 = vmatmul.mubr.f32.gmra.mrb[0].mxu0 %v1176
    %v1244 = vpop.f32.mrb[0].mxu0
    %v1245 = vadd.f32 0.0, %v1244
    %v1246 = vpop.f32.mrb[0].mxu0
    %v1247 = vadd.f32 0.0, %v1246
    %1248 = vdwg.mxu0
    %v1251 = vrot.slane %v1173, 7
    %v1252 = vsel %vm149, %v1251, %v1172
    %v1253 = vsel %vm151, %v1252, 0
    %1255 = vmatprep.subr.mxu0 %v47
    %1256 = vmatpush1.msra.mxu0 %v46
    %1257 = vmatprep.subr.mxu0 %v49
    %1258 = vmatpush1.msra.mxu0 %v48
    %1259 = vmatprep.subr.mxu0 0.0
    %1260 = vmatpush1.msra.mxu0 0.0
    %1261 = vmatprep.subr.mxu0 0.0
    %1262 = vmatpush1.msra.mxu0 0.0
    %1263 = vmatprep.subr.mxu0 0.0
    %1264 = vmatpush1.msra.mxu0 0.0
    %1265 = vmatprep.subr.mxu0 0.0
    %1266 = vmatpush1.msra.mxu0 0.0
    %1267 = vmatprep.subr.mxu0 0.0
    %1268 = vmatpush1.msra.mxu0 0.0
    %1269 = vmatprep.subr.mxu0 0.0
    %1270 = vmatpush1.msra.mxu0 0.0
    %1271 = vmatprep.subr.mxu0 0.0
    %1272 = vmatpush1.msra.mxu0 0.0
    %1273 = vmatprep.subr.mxu0 0.0
    %1274 = vmatpush1.msra.mxu0 0.0
    %1275 = vmatprep.subr.mxu0 0.0
    %1276 = vmatpush1.msra.mxu0 0.0
    %1277 = vmatprep.subr.mxu0 0.0
    %1278 = vmatpush1.msra.mxu0 0.0
    %1279 = vmatprep.subr.mxu0 0.0
    %1280 = vmatpush1.msra.mxu0 0.0
    %1281 = vmatprep.subr.mxu0 0.0
    %1282 = vmatpush1.msra.mxu0 0.0
    %1283 = vmatprep.subr.mxu0 0.0
    %1284 = vmatpush1.msra.mxu0 0.0
    %1285 = vmatprep.subr.mxu0 0.0
    %1286 = vmatpush1.msra.mxu0 0.0
    %1287 = vmatprep.subr.mxu0 0.0
    %1288 = vmatpush1.msra.mxu0 0.0
    %1289 = vmatprep.subr.mxu0 0.0
    %1290 = vmatpush1.msra.mxu0 0.0
    %1291 = vmatprep.subr.mxu0 0.0
    %1292 = vmatpush1.msra.mxu0 0.0
    %1293 = vmatprep.subr.mxu0 0.0
    %1294 = vmatpush1.msra.mxu0 0.0
    %1295 = vmatprep.subr.mxu0 0.0
    %1296 = vmatpush1.msra.mxu0 0.0
    %1297 = vmatprep.subr.mxu0 0.0
    %1298 = vmatpush1.msra.mxu0 0.0
    %1299 = vmatprep.subr.mxu0 0.0
    %1300 = vmatpush1.msra.mxu0 0.0
    %1301 = vmatprep.subr.mxu0 0.0
    %1302 = vmatpush1.msra.mxu0 0.0
    %1303 = vmatprep.subr.mxu0 0.0
    %1304 = vmatpush1.msra.mxu0 0.0
    %1305 = vmatprep.subr.mxu0 0.0
    %1306 = vmatpush1.msra.mxu0 0.0
    %1307 = vmatprep.subr.mxu0 0.0
    %1308 = vmatpush1.msra.mxu0 0.0
    %1309 = vmatprep.subr.mxu0 0.0
    %1310 = vmatpush1.msra.mxu0 0.0
    %1311 = vmatprep.subr.mxu0 0.0
    %1312 = vmatpush1.msra.mxu0 0.0
    %1313 = vmatprep.subr.mxu0 0.0
    %1314 = vmatpush1.msra.mxu0 0.0
    %1315 = vmatprep.subr.mxu0 0.0
    %1316 = vmatpush1.msra.mxu0 0.0
    %1317 = vmatprep.subr.mxu0 0.0
    %1318 = vmatpush1.msra.mxu0 0.0
    %1319 = vmatprep.mubr.f32.mxu0 0.0
    %1320 = vmatmul.mubr.f32.gmra.mrb[0].mxu0 %v1253
    %v1321 = vpop.f32.mrb[0].mxu0
    %v1322 = vadd.f32 %v1245, %v1321
    %v1323 = vpop.f32.mrb[0].mxu0
    %v1324 = vadd.f32 %v1247, %v1323
    %1325 = vdwg.mxu0
    %v1326 = vadd.f32 %v1322, %v229
    %v1327 = vadd.f32 %v1324, %v233
    %v1328 = vxor.u32 %v1326, 2147483648
    %v1329 = vmul.f32 %v1328, 1.442695
    %v1330 = vpow.pop %v1329
    %v1331 = vadd.f32 %v1330, 1.0
    %v1332 = vrcp.pop %v1331
    %v1333 = vmul.f32 1.0, %v1332
    %v1334 = vtanh.pop %v1327
    %v1335 = vxor.u32 %v1327, 2147483648
    %v1336 = vmul.f32 %v1335, 1.442695
    %v1337 = vpow.pop %v1336
    %v1338 = vadd.f32 %v1337, 1.0
    %v1339 = vrcp.pop %v1338
    %v1340 = vmul.f32 1.0, %v1339
    %v1341 = vmul.f32 %v1333, %v1130
    %v1342 = vmul.f32 %v1333, %v1334
    %1344 = vrot.lane.b32.xlu0 %v1342, 64
    %v1345 = vpop.permute.xlu0 %1344
    %v1347 = vadd.f32 %v1341, %v1345
    %v1348 = vtanh.pop %v1347
    %v1349 = vmul.f32 %v1340, %v1348
    %v1352 = vunpack.c.l.s4 1966171168
    %v1353 = vunpack.c.0.s8 %v1352
    %v1354 = vlaneseq
    %v1355 = vshrl.u32 %v1354, 7
    %v1356 = vsub.s32 %v1353, %v1355
    %v1357 = vrot.slane %v1349, %v1356
    %v1358 = vcombine.high %v1357, %v1357
    %v1360 = vunpack.c.l.s4 1966171168
    %v1361 = vunpack.c.0.s8 %v1360
    %v1362 = vlaneseq
    %v1363 = vshrl.u32 %v1362, 7
    %v1364 = vsub.s32 %v1361, %v1363
    %v1365 = vrot.slane %v1357, %v1364
    %v1367 = vunpack.c.l.s4 1966171168
    %v1368 = vunpack.c.0.s8 %v1367
    %v1369 = vlaneseq
    %v1370 = vshrl.u32 %v1369, 7
    %v1371 = vsub.s32 %v1368, %v1370
    %v1372 = vrot.slane %v1358, %v1371
    %v1373 = vlaneseq
    %v1374 = vshrl.u32 %v1373, 7
    %v1375 = vsub.s32 0, %v1374
    %v1376 = vrot.slane %v1365, %v1375
    %v1377 = vlaneseq
    %v1378 = vshrl.u32 %v1377, 7
    %v1379 = vsub.s32 0, %v1378
    %v1380 = vrot.slane %v1372, %v1379
    %1381 = vrot.lane.b32.xlu0 %v1376, 64
    %v1382 = vpop.permute.xlu0 %1381
    %1383 = vrot.lane.b32.xlu0 %v1380, 64
    %v1384 = vpop.permute.xlu0 %1383
    %1387 = vst.msk [vmem:[#allocation2 + $0x5] sm:$0x1] %vm301, %v1382
    %1388 = vst.msk [vmem:[#allocation2 + $0xd] sm:$0x1] %vm301, %v1384
    %v1389 = vld [vmem:[%s0 + $0x6] sm:$0x1]
    %v1390 = vld [vmem:[%s0 + $0xe] sm:$0x1]
    %1391 = vrot.lane.b32.xlu0 %v1349, 64
    %v1392 = vpop.permute.xlu0 %1391
    %v1393 = vsel %vm71, %v1392, 0
    %1395 = vmatprep.subr.mxu0 %v51
    %1396 = vmatpush1.msra.mxu0 %v50
    %1397 = vmatprep.subr.mxu0 %v53
    %1398 = vmatpush1.msra.mxu0 %v52
    %1399 = vmatprep.subr.mxu0 %v55
    %1400 = vmatpush1.msra.mxu0 %v54
    %1401 = vmatprep.subr.mxu0 %v57
    %1402 = vmatpush1.msra.mxu0 %v56
    %1403 = vmatprep.subr.mxu0 %v59
    %1404 = vmatpush1.msra.mxu0 %v58
    %1405 = vmatprep.subr.mxu0 %v61
    %1406 = vmatpush1.msra.mxu0 %v60
    %1407 = vmatprep.subr.mxu0 %v63
    %1408 = vmatpush1.msra.mxu0 %v62
    %1409 = vmatprep.subr.mxu0 %v65
    %1410 = vmatpush1.msra.mxu0 %v64
    %1411 = vmatprep.subr.mxu0 0.0
    %1412 = vmatpush1.msra.mxu0 0.0
    %1413 = vmatprep.subr.mxu0 0.0
    %1414 = vmatpush1.msra.mxu0 0.0
    %1415 = vmatprep.subr.mxu0 0.0
    %1416 = vmatpush1.msra.mxu0 0.0
    %1417 = vmatprep.subr.mxu0 0.0
    %1418 = vmatpush1.msra.mxu0 0.0
    %1419 = vmatprep.subr.mxu0 0.0
    %1420 = vmatpush1.msra.mxu0 0.0
    %1421 = vmatprep.subr.mxu0 0.0
    %1422 = vmatpush1.msra.mxu0 0.0
    %1423 = vmatprep.subr.mxu0 0.0
    %1424 = vmatpush1.msra.mxu0 0.0
    %1425 = vmatprep.subr.mxu0 0.0
    %1426 = vmatpush1.msra.mxu0 0.0
    %1427 = vmatprep.subr.mxu0 0.0
    %1428 = vmatpush1.msra.mxu0 0.0
    %1429 = vmatprep.subr.mxu0 0.0
    %1430 = vmatpush1.msra.mxu0 0.0
    %1431 = vmatprep.subr.mxu0 0.0
    %1432 = vmatpush1.msra.mxu0 0.0
    %1433 = vmatprep.subr.mxu0 0.0
    %1434 = vmatpush1.msra.mxu0 0.0
    %1435 = vmatprep.subr.mxu0 0.0
    %1436 = vmatpush1.msra.mxu0 0.0
    %1437 = vmatprep.subr.mxu0 0.0
    %1438 = vmatpush1.msra.mxu0 0.0
    %1439 = vmatprep.subr.mxu0 0.0
    %1440 = vmatpush1.msra.mxu0 0.0
    %1441 = vmatprep.subr.mxu0 0.0
    %1442 = vmatpush1.msra.mxu0 0.0
    %1443 = vmatprep.subr.mxu0 0.0
    %1444 = vmatpush1.msra.mxu0 0.0
    %1445 = vmatprep.subr.mxu0 0.0
    %1446 = vmatpush1.msra.mxu0 0.0
    %1447 = vmatprep.subr.mxu0 0.0
    %1448 = vmatpush1.msra.mxu0 0.0
    %1449 = vmatprep.subr.mxu0 0.0
    %1450 = vmatpush1.msra.mxu0 0.0
    %1451 = vmatprep.subr.mxu0 0.0
    %1452 = vmatpush1.msra.mxu0 0.0
    %1453 = vmatprep.subr.mxu0 0.0
    %1454 = vmatpush1.msra.mxu0 0.0
    %1455 = vmatprep.subr.mxu0 0.0
    %1456 = vmatpush1.msra.mxu0 0.0
    %1457 = vmatprep.subr.mxu0 0.0
    %1458 = vmatpush1.msra.mxu0 0.0
    %1459 = vmatprep.mubr.f32.mxu0 0.0
    %1460 = vmatmul.mubr.f32.gmra.mrb[0].mxu0 %v1393
    %v1461 = vpop.f32.mrb[0].mxu0
    %v1462 = vadd.f32 0.0, %v1461
    %v1463 = vpop.f32.mrb[0].mxu0
    %v1464 = vadd.f32 0.0, %v1463
    %1465 = vdwg.mxu0
    %v1468 = vrot.slane %v1390, 7
    %v1469 = vsel %vm149, %v1468, %v1389
    %v1470 = vsel %vm151, %v1469, 0
    %1472 = vmatprep.subr.mxu0 %v47
    %1473 = vmatpush1.msra.mxu0 %v46
    %1474 = vmatprep.subr.mxu0 %v49
    %1475 = vmatpush1.msra.mxu0 %v48
    %1476 = vmatprep.subr.mxu0 0.0
    %1477 = vmatpush1.msra.mxu0 0.0
    %1478 = vmatprep.subr.mxu0 0.0
    %1479 = vmatpush1.msra.mxu0 0.0
    %1480 = vmatprep.subr.mxu0 0.0
    %1481 = vmatpush1.msra.mxu0 0.0
    %1482 = vmatprep.subr.mxu0 0.0
    %1483 = vmatpush1.msra.mxu0 0.0
    %1484 = vmatprep.subr.mxu0 0.0
    %1485 = vmatpush1.msra.mxu0 0.0
    %1486 = vmatprep.subr.mxu0 0.0
    %1487 = vmatpush1.msra.mxu0 0.0
    %1488 = vmatprep.subr.mxu0 0.0
    %1489 = vmatpush1.msra.mxu0 0.0
    %1490 = vmatprep.subr.mxu0 0.0
    %1491 = vmatpush1.msra.mxu0 0.0
    %1492 = vmatprep.subr.mxu0 0.0
    %1493 = vmatpush1.msra.mxu0 0.0
    %1494 = vmatprep.subr.mxu0 0.0
    %1495 = vmatpush1.msra.mxu0 0.0
    %1496 = vmatprep.subr.mxu0 0.0
    %1497 = vmatpush1.msra.mxu0 0.0
    %1498 = vmatprep.subr.mxu0 0.0
    %1499 = vmatpush1.msra.mxu0 0.0
    %1500 = vmatprep.subr.mxu0 0.0
    %1501 = vmatpush1.msra.mxu0 0.0
    %1502 = vmatprep.subr.mxu0 0.0
    %1503 = vmatpush1.msra.mxu0 0.0
    %1504 = vmatprep.subr.mxu0 0.0
    %1505 = vmatpush1.msra.mxu0 0.0
    %1506 = vmatprep.subr.mxu0 0.0
    %1507 = vmatpush1.msra.mxu0 0.0
    %1508 = vmatprep.subr.mxu0 0.0
    %1509 = vmatpush1.msra.mxu0 0.0
    %1510 = vmatprep.subr.mxu0 0.0
    %1511 = vmatpush1.msra.mxu0 0.0
    %1512 = vmatprep.subr.mxu0 0.0
    %1513 = vmatpush1.msra.mxu0 0.0
    %1514 = vmatprep.subr.mxu0 0.0
    %1515 = vmatpush1.msra.mxu0 0.0
    %1516 = vmatprep.subr.mxu0 0.0
    %1517 = vmatpush1.msra.mxu0 0.0
    %1518 = vmatprep.subr.mxu0 0.0
    %1519 = vmatpush1.msra.mxu0 0.0
    %1520 = vmatprep.subr.mxu0 0.0
    %1521 = vmatpush1.msra.mxu0 0.0
    %1522 = vmatprep.subr.mxu0 0.0
    %1523 = vmatpush1.msra.mxu0 0.0
    %1524 = vmatprep.subr.mxu0 0.0
    %1525 = vmatpush1.msra.mxu0 0.0
    %1526 = vmatprep.subr.mxu0 0.0
    %1527 = vmatpush1.msra.mxu0 0.0
    %1528 = vmatprep.subr.mxu0 0.0
    %1529 = vmatpush1.msra.mxu0 0.0
    %1530 = vmatprep.subr.mxu0 0.0
    %1531 = vmatpush1.msra.mxu0 0.0
    %1532 = vmatprep.subr.mxu0 0.0
    %1533 = vmatpush1.msra.mxu0 0.0
    %1534 = vmatprep.subr.mxu0 0.0
    %1535 = vmatpush1.msra.mxu0 0.0
    %1536 = vmatprep.mubr.f32.mxu0 0.0
    %1537 = vmatmul.mubr.f32.gmra.mrb[0].mxu0 %v1470
    %v1538 = vpop.f32.mrb[0].mxu0
    %v1539 = vadd.f32 %v1462, %v1538
    %v1540 = vpop.f32.mrb[0].mxu0
    %v1541 = vadd.f32 %v1464, %v1540
    %1542 = vdwg.mxu0
    %v1543 = vadd.f32 %v1539, %v229
    %v1544 = vadd.f32 %v1541, %v233
    %v1545 = vxor.u32 %v1543, 2147483648
    %v1546 = vmul.f32 %v1545, 1.442695
    %v1547 = vpow.pop %v1546
    %v1548 = vadd.f32 %v1547, 1.0
    %v1549 = vrcp.pop %v1548
    %v1550 = vmul.f32 1.0, %v1549
    %v1551 = vtanh.pop %v1544
    %v1552 = vxor.u32 %v1544, 2147483648
    %v1553 = vmul.f32 %v1552, 1.442695
    %v1554 = vpow.pop %v1553
    %v1555 = vadd.f32 %v1554, 1.0
    %v1556 = vrcp.pop %v1555
    %v1557 = vmul.f32 1.0, %v1556
    %v1558 = vmul.f32 %v1550, %v1347
    %v1559 = vmul.f32 %v1550, %v1551
    %1561 = vrot.lane.b32.xlu0 %v1559, 64
    %v1562 = vpop.permute.xlu0 %1561
    %v1564 = vadd.f32 %v1558, %v1562
    %v1565 = vtanh.pop %v1564
    %v1566 = vmul.f32 %v1557, %v1565
    %v1569 = vunpack.c.l.s4 1966171168
    %v1570 = vunpack.c.0.s8 %v1569
    %v1571 = vlaneseq
    %v1572 = vshrl.u32 %v1571, 7
    %v1573 = vsub.s32 %v1570, %v1572
    %v1574 = vrot.slane %v1566, %v1573
    %v1575 = vcombine.high %v1574, %v1574
    %v1577 = vunpack.c.l.s4 1966171168
    %v1578 = vunpack.c.0.s8 %v1577
    %v1579 = vlaneseq
    %v1580 = vshrl.u32 %v1579, 7
    %v1581 = vsub.s32 %v1578, %v1580
    %v1582 = vrot.slane %v1574, %v1581
    %v1584 = vunpack.c.l.s4 1966171168
    %v1585 = vunpack.c.0.s8 %v1584
    %v1586 = vlaneseq
    %v1587 = vshrl.u32 %v1586, 7
    %v1588 = vsub.s32 %v1585, %v1587
    %v1589 = vrot.slane %v1575, %v1588
    %v1590 = vlaneseq
    %v1591 = vshrl.u32 %v1590, 7
    %v1592 = vsub.s32 0, %v1591
    %v1593 = vrot.slane %v1582, %v1592
    %v1594 = vlaneseq
    %v1595 = vshrl.u32 %v1594, 7
    %v1596 = vsub.s32 0, %v1595
    %v1597 = vrot.slane %v1589, %v1596
    %1598 = vrot.lane.b32.xlu0 %v1593, 64
    %v1599 = vpop.permute.xlu0 %1598
    %1600 = vrot.lane.b32.xlu0 %v1597, 64
    %v1601 = vpop.permute.xlu0 %1600
    %1604 = vst.msk [vmem:[#allocation2 + $0x6] sm:$0x1] %vm301, %v1599
    %1605 = vst.msk [vmem:[#allocation2 + $0xe] sm:$0x1] %vm301, %v1601
    %v1606 = vld [vmem:[%s0 + $0x7] sm:$0x1]
    %v1607 = vld [vmem:[%s0 + $0xf] sm:$0x1]
    %1608 = vrot.lane.b32.xlu0 %v1566, 64
    %v1609 = vpop.permute.xlu0 %1608
    %v1610 = vsel %vm71, %v1609, 0
    %1612 = vmatprep.subr.mxu0 %v51
    %1613 = vmatpush1.msra.mxu0 %v50
    %1614 = vmatprep.subr.mxu0 %v53
    %1615 = vmatpush1.msra.mxu0 %v52
    %1616 = vmatprep.subr.mxu0 %v55
    %1617 = vmatpush1.msra.mxu0 %v54
    %1618 = vmatprep.subr.mxu0 %v57
    %1619 = vmatpush1.msra.mxu0 %v56
    %1620 = vmatprep.subr.mxu0 %v59
    %1621 = vmatpush1.msra.mxu0 %v58
    %1622 = vmatprep.subr.mxu0 %v61
    %1623 = vmatpush1.msra.mxu0 %v60
    %1624 = vmatprep.subr.mxu0 %v63
    %1625 = vmatpush1.msra.mxu0 %v62
    %1626 = vmatprep.subr.mxu0 %v65
    %1627 = vmatpush1.msra.mxu0 %v64
    %1628 = vmatprep.subr.mxu0 0.0
    %1629 = vmatpush1.msra.mxu0 0.0
    %1630 = vmatprep.subr.mxu0 0.0
    %1631 = vmatpush1.msra.mxu0 0.0
    %1632 = vmatprep.subr.mxu0 0.0
    %1633 = vmatpush1.msra.mxu0 0.0
    %1634 = vmatprep.subr.mxu0 0.0
    %1635 = vmatpush1.msra.mxu0 0.0
    %1636 = vmatprep.subr.mxu0 0.0
    %1637 = vmatpush1.msra.mxu0 0.0
    %1638 = vmatprep.subr.mxu0 0.0
    %1639 = vmatpush1.msra.mxu0 0.0
    %1640 = vmatprep.subr.mxu0 0.0
    %1641 = vmatpush1.msra.mxu0 0.0
    %1642 = vmatprep.subr.mxu0 0.0
    %1643 = vmatpush1.msra.mxu0 0.0
    %1644 = vmatprep.subr.mxu0 0.0
    %1645 = vmatpush1.msra.mxu0 0.0
    %1646 = vmatprep.subr.mxu0 0.0
    %1647 = vmatpush1.msra.mxu0 0.0
    %1648 = vmatprep.subr.mxu0 0.0
    %1649 = vmatpush1.msra.mxu0 0.0
    %1650 = vmatprep.subr.mxu0 0.0
    %1651 = vmatpush1.msra.mxu0 0.0
    %1652 = vmatprep.subr.mxu0 0.0
    %1653 = vmatpush1.msra.mxu0 0.0
    %1654 = vmatprep.subr.mxu0 0.0
    %1655 = vmatpush1.msra.mxu0 0.0
    %1656 = vmatprep.subr.mxu0 0.0
    %1657 = vmatpush1.msra.mxu0 0.0
    %1658 = vmatprep.subr.mxu0 0.0
    %1659 = vmatpush1.msra.mxu0 0.0
    %1660 = vmatprep.subr.mxu0 0.0
    %1661 = vmatpush1.msra.mxu0 0.0
    %1662 = vmatprep.subr.mxu0 0.0
    %1663 = vmatpush1.msra.mxu0 0.0
    %1664 = vmatprep.subr.mxu0 0.0
    %1665 = vmatpush1.msra.mxu0 0.0
    %1666 = vmatprep.subr.mxu0 0.0
    %1667 = vmatpush1.msra.mxu0 0.0
    %1668 = vmatprep.subr.mxu0 0.0
    %1669 = vmatpush1.msra.mxu0 0.0
    %1670 = vmatprep.subr.mxu0 0.0
    %1671 = vmatpush1.msra.mxu0 0.0
    %1672 = vmatprep.subr.mxu0 0.0
    %1673 = vmatpush1.msra.mxu0 0.0
    %1674 = vmatprep.subr.mxu0 0.0
    %1675 = vmatpush1.msra.mxu0 0.0
    %1676 = vmatprep.mubr.f32.mxu0 0.0
    %1677 = vmatmul.mubr.f32.gmra.mrb[0].mxu0 %v1610
    %v1678 = vpop.f32.mrb[0].mxu0
    %v1679 = vadd.f32 0.0, %v1678
    %v1680 = vpop.f32.mrb[0].mxu0
    %v1681 = vadd.f32 0.0, %v1680
    %1682 = vdwg.mxu0
    %v1685 = vrot.slane %v1607, 7
    %v1686 = vsel %vm149, %v1685, %v1606
    %v1687 = vsel %vm151, %v1686, 0
    %1689 = vmatprep.subr.mxu0 %v47
    %1690 = vmatpush1.msra.mxu0 %v46
    %1691 = vmatprep.subr.mxu0 %v49
    %1692 = vmatpush1.msra.mxu0 %v48
    %1693 = vmatprep.subr.mxu0 0.0
    %1694 = vmatpush1.msra.mxu0 0.0
    %1695 = vmatprep.subr.mxu0 0.0
    %1696 = vmatpush1.msra.mxu0 0.0
    %1697 = vmatprep.subr.mxu0 0.0
    %1698 = vmatpush1.msra.mxu0 0.0
    %1699 = vmatprep.subr.mxu0 0.0
    %1700 = vmatpush1.msra.mxu0 0.0
    %1701 = vmatprep.subr.mxu0 0.0
    %1702 = vmatpush1.msra.mxu0 0.0
    %1703 = vmatprep.subr.mxu0 0.0
    %1704 = vmatpush1.msra.mxu0 0.0
    %1705 = vmatprep.subr.mxu0 0.0
    %1706 = vmatpush1.msra.mxu0 0.0
    %1707 = vmatprep.subr.mxu0 0.0
    %1708 = vmatpush1.msra.mxu0 0.0
    %1709 = vmatprep.subr.mxu0 0.0
    %1710 = vmatpush1.msra.mxu0 0.0
    %1711 = vmatprep.subr.mxu0 0.0
    %1712 = vmatpush1.msra.mxu0 0.0
    %1713 = vmatprep.subr.mxu0 0.0
    %1714 = vmatpush1.msra.mxu0 0.0
    %1715 = vmatprep.subr.mxu0 0.0
    %1716 = vmatpush1.msra.mxu0 0.0
    %1717 = vmatprep.subr.mxu0 0.0
    %1718 = vmatpush1.msra.mxu0 0.0
    %1719 = vmatprep.subr.mxu0 0.0
    %1720 = vmatpush1.msra.mxu0 0.0
    %1721 = vmatprep.subr.mxu0 0.0
    %1722 = vmatpush1.msra.mxu0 0.0
    %1723 = vmatprep.subr.mxu0 0.0
    %1724 = vmatpush1.msra.mxu0 0.0
    %1725 = vmatprep.subr.mxu0 0.0
    %1726 = vmatpush1.msra.mxu0 0.0
    %1727 = vmatprep.subr.mxu0 0.0
    %1728 = vmatpush1.msra.mxu0 0.0
    %1729 = vmatprep.subr.mxu0 0.0
    %1730 = vmatpush1.msra.mxu0 0.0
    %1731 = vmatprep.subr.mxu0 0.0
    %1732 = vmatpush1.msra.mxu0 0.0
    %1733 = vmatprep.subr.mxu0 0.0
    %1734 = vmatpush1.msra.mxu0 0.0
    %1735 = vmatprep.subr.mxu0 0.0
    %1736 = vmatpush1.msra.mxu0 0.0
    %1737 = vmatprep.subr.mxu0 0.0
    %1738 = vmatpush1.msra.mxu0 0.0
    %1739 = vmatprep.subr.mxu0 0.0
    %1740 = vmatpush1.msra.mxu0 0.0
    %1741 = vmatprep.subr.mxu0 0.0
    %1742 = vmatpush1.msra.mxu0 0.0
    %1743 = vmatprep.subr.mxu0 0.0
    %1744 = vmatpush1.msra.mxu0 0.0
    %1745 = vmatprep.subr.mxu0 0.0
    %1746 = vmatpush1.msra.mxu0 0.0
    %1747 = vmatprep.subr.mxu0 0.0
    %1748 = vmatpush1.msra.mxu0 0.0
    %1749 = vmatprep.subr.mxu0 0.0
    %1750 = vmatpush1.msra.mxu0 0.0
    %1751 = vmatprep.subr.mxu0 0.0
    %1752 = vmatpush1.msra.mxu0 0.0
    %1753 = vmatprep.mubr.f32.mxu0 0.0
    %1754 = vmatmul.mubr.f32.gmra.mrb[0].mxu0 %v1687
    %v1755 = vpop.f32.mrb[0].mxu0
    %v1756 = vadd.f32 %v1679, %v1755
    %v1757 = vpop.f32.mrb[0].mxu0
    %v1758 = vadd.f32 %v1681, %v1757
    %1759 = vdwg.mxu0
    %v1760 = vadd.f32 %v1756, %v229
    %v1761 = vadd.f32 %v1758, %v233
    %v1762 = vxor.u32 %v1760, 2147483648
    %v1763 = vmul.f32 %v1762, 1.442695
    %v1764 = vpow.pop %v1763
    %v1765 = vadd.f32 %v1764, 1.0
    %v1766 = vrcp.pop %v1765
    %v1767 = vmul.f32 1.0, %v1766
    %v1768 = vtanh.pop %v1761
    %v1769 = vxor.u32 %v1761, 2147483648
    %v1770 = vmul.f32 %v1769, 1.442695
    %v1771 = vpow.pop %v1770
    %v1772 = vadd.f32 %v1771, 1.0
    %v1773 = vrcp.pop %v1772
    %v1774 = vmul.f32 1.0, %v1773
    %v1775 = vmul.f32 %v1767, %v1564
    %v1776 = vmul.f32 %v1767, %v1768
    %1778 = vrot.lane.b32.xlu0 %v1776, 64
    %v1779 = vpop.permute.xlu0 %1778
    %v1781 = vadd.f32 %v1775, %v1779
    %v1782 = vtanh.pop %v1781
    %v1783 = vmul.f32 %v1774, %v1782
    %v1786 = vunpack.c.l.s4 1966171168
    %v1787 = vunpack.c.0.s8 %v1786
    %v1788 = vlaneseq
    %v1789 = vshrl.u32 %v1788, 7
    %v1790 = vsub.s32 %v1787, %v1789
    %v1791 = vrot.slane %v1783, %v1790
    %v1792 = vcombine.high %v1791, %v1791
    %v1794 = vunpack.c.l.s4 1966171168
    %v1795 = vunpack.c.0.s8 %v1794
    %v1796 = vlaneseq
    %v1797 = vshrl.u32 %v1796, 7
    %v1798 = vsub.s32 %v1795, %v1797
    %v1799 = vrot.slane %v1791, %v1798
    %v1801 = vunpack.c.l.s4 1966171168
    %v1802 = vunpack.c.0.s8 %v1801
    %v1803 = vlaneseq
    %v1804 = vshrl.u32 %v1803, 7
    %v1805 = vsub.s32 %v1802, %v1804
    %v1806 = vrot.slane %v1792, %v1805
    %v1807 = vlaneseq
    %v1808 = vshrl.u32 %v1807, 7
    %v1809 = vsub.s32 0, %v1808
    %v1810 = vrot.slane %v1799, %v1809
    %v1811 = vlaneseq
    %v1812 = vshrl.u32 %v1811, 7
    %v1813 = vsub.s32 0, %v1812
    %v1814 = vrot.slane %v1806, %v1813
    %1815 = vrot.lane.b32.xlu0 %v1810, 64
    %v1816 = vpop.permute.xlu0 %1815
    %1817 = vrot.lane.b32.xlu0 %v1814, 64
    %v1818 = vpop.permute.xlu0 %1817
    %1821 = vst.msk [vmem:[#allocation2 + $0x7] sm:$0x1] %vm301, %v1816
    %1822 = vst.msk [vmem:[#allocation2 + $0xf] sm:$0x1] %vm301, %v1818
    %1823 = vrot.lane.b32.xlu0 %v1783, 64
    %v1824 = vpop.permute.xlu0 %1823
    %vm1826 = vcmask 517120
    %1827 = vst.msk [vmem:[%s9] sm:$0x3] %vm1826, %v1824
    %1829 = vrot.lane.b32.xlu0 %v1781, 64
    %v1830 = vpop.permute.xlu0 %1829
    %1832 = vst.msk [vmem:[%s10] sm:$0x3] %vm1826, %v1830
    %v1833 = vld [vmem:[#allocation2] sm:$0xff]
    %v1834 = vld [vmem:[#allocation2 + $0x8] sm:$0xff]
    %v1835 = vld [vmem:[%s4] sm:$0xff]
    %v1836 = vld [vmem:[%s4 + $0x8] sm:$0xff]
    %v1837 = vld [vmem:[%s4 + $0x10] sm:$0xff]
    %v1838 = vld [vmem:[%s4 + $0x18] sm:$0xff]
    %v1839 = vld [vmem:[%s4 + $0x20] sm:$0xff]
    %v1840 = vld [vmem:[%s4 + $0x28] sm:$0xff]
    %v1841 = vld [vmem:[%s4 + $0x30] sm:$0xff]
    %v1842 = vld [vmem:[%s4 + $0x38] sm:$0xff]
    %v1843 = vld [vmem:[%s5] sm:$0x1]
    %v1845 = vlaneseq
    %v1846 = vshrl.u32 %v1845, 7
    %v1847 = vsub.s32 0, %v1846
    %v1848 = vrot.slane %v1843, %v1847
    %v1851 = vsel %vm71, %v1833, 0
    %v1854 = vsel %vm71, %v1834, 0
    %1856 = vmatprep.subr.mxu0 0.0
    %1857 = vmatpush1.msra.mxu0 %v1835
    %1858 = vmatprep.subr.mxu0 0.0
    %1859 = vmatpush1.msra.mxu0 %v1836
    %1860 = vmatprep.subr.mxu0 0.0
    %1861 = vmatpush1.msra.mxu0 %v1837
    %1862 = vmatprep.subr.mxu0 0.0
    %1863 = vmatpush1.msra.mxu0 %v1838
    %1864 = vmatprep.subr.mxu0 0.0
    %1865 = vmatpush1.msra.mxu0 %v1839
    %1866 = vmatprep.subr.mxu0 0.0
    %1867 = vmatpush1.msra.mxu0 %v1840
    %1868 = vmatprep.subr.mxu0 0.0
    %1869 = vmatpush1.msra.mxu0 %v1841
    %1870 = vmatprep.subr.mxu0 0.0
    %1871 = vmatpush1.msra.mxu0 %v1842
    %1872 = vmatprep.subr.mxu0 0.0
    %1873 = vmatpush1.msra.mxu0 0.0
    %1874 = vmatprep.subr.mxu0 0.0
    %1875 = vmatpush1.msra.mxu0 0.0
    %1876 = vmatprep.subr.mxu0 0.0
    %1877 = vmatpush1.msra.mxu0 0.0
    %1878 = vmatprep.subr.mxu0 0.0
    %1879 = vmatpush1.msra.mxu0 0.0
    %1880 = vmatprep.subr.mxu0 0.0
    %1881 = vmatpush1.msra.mxu0 0.0
    %1882 = vmatprep.subr.mxu0 0.0
    %1883 = vmatpush1.msra.mxu0 0.0
    %1884 = vmatprep.subr.mxu0 0.0
    %1885 = vmatpush1.msra.mxu0 0.0
    %1886 = vmatprep.subr.mxu0 0.0
    %1887 = vmatpush1.msra.mxu0 0.0
    %1888 = vmatprep.subr.mxu0 0.0
    %1889 = vmatpush1.msra.mxu0 0.0
    %1890 = vmatprep.subr.mxu0 0.0
    %1891 = vmatpush1.msra.mxu0 0.0
    %1892 = vmatprep.subr.mxu0 0.0
    %1893 = vmatpush1.msra.mxu0 0.0
    %1894 = vmatprep.subr.mxu0 0.0
    %1895 = vmatpush1.msra.mxu0 0.0
    %1896 = vmatprep.subr.mxu0 0.0
    %1897 = vmatpush1.msra.mxu0 0.0
    %1898 = vmatprep.subr.mxu0 0.0
    %1899 = vmatpush1.msra.mxu0 0.0
    %1900 = vmatprep.subr.mxu0 0.0
    %1901 = vmatpush1.msra.mxu0 0.0
    %1902 = vmatprep.subr.mxu0 0.0
    %1903 = vmatpush1.msra.mxu0 0.0
    %1904 = vmatprep.subr.mxu0 0.0
    %1905 = vmatpush1.msra.mxu0 0.0
    %1906 = vmatprep.subr.mxu0 0.0
    %1907 = vmatpush1.msra.mxu0 0.0
    %1908 = vmatprep.subr.mxu0 0.0
    %1909 = vmatpush1.msra.mxu0 0.0
    %1910 = vmatprep.subr.mxu0 0.0
    %1911 = vmatpush1.msra.mxu0 0.0
    %1912 = vmatprep.subr.mxu0 0.0
    %1913 = vmatpush1.msra.mxu0 0.0
    %1914 = vmatprep.subr.mxu0 0.0
    %1915 = vmatpush1.msra.mxu0 0.0
    %1916 = vmatprep.subr.mxu0 0.0
    %1917 = vmatpush1.msra.mxu0 0.0
    %1918 = vmatprep.subr.mxu0 0.0
    %1919 = vmatpush1.msra.mxu0 0.0
    %1920 = vmatprep.mubr.f32.mxu0 0.0
    %1921 = vmatmul.mubr.f32.gmra.mrb[0].mxu0 %v1851
    %v1922 = vpop.f32.mrb[0].mxu0
    %v1923 = vadd.f32 %v1848, %v1922
    %v1924 = vpop.f32.mrb[0].mxu0
    %1925 = vmatprep.mubr.f32.mxu0 0.0
    %1926 = vmatmul.mubr.f32.gmra.mrb[0].mxu0 %v1854
    %v1927 = vpop.f32.mrb[0].mxu0
    %v1928 = vadd.f32 %v1848, %v1927
    %v1929 = vpop.f32.mrb[0].mxu0
    %1930 = vdwg.mxu0
    %vm1931 = vcmask 39936
    %1932 = vst.msk [vmem:[%s8] sm:$0xff] %vm1931, %v1923
    %1933 = vst.msk [vmem:[%s8 + $0x8] sm:$0xff] %vm1931, %v1928
    // Predicated region
    $region38: #{fcnet_forward.1} parent=1 // pred_check
      _
    $region39: #{fcnet_forward.1} parent=1 // pred_check_branch
      %1935 = sbr.rel (0) target = $region41
    $region40: #{fcnet_forward.1} parent=1 // pred_region
      _
    $region41: #{fcnet_forward.1} parent=1 // pred_fallthru
      _
    // Predicated region
    $region42: #{fcnet_forward.1} parent=1 // pred_check
      _
    $region43: #{fcnet_forward.1} parent=1 // pred_check_branch
      %1937 = sbr.rel (0) target = $region45
    $region44: #{fcnet_forward.1} parent=1 // pred_region
      _
    $region45: #{fcnet_forward.1} parent=1 // pred_fallthru
      _
    // Predicated region
    $region46: #{fcnet_forward.1} parent=1 // pred_check
      _
    $region47: #{fcnet_forward.1} parent=1 // pred_check_branch
      %1939 = sbr.rel (0) target = $region49
    $region48: #{fcnet_forward.1} parent=1 // pred_region
      _
    $region49: #{fcnet_forward.1} parent=1 // pred_fallthru
      _
    // Predicated region
    $region50: #{fcnet_forward.1} parent=1 // pred_check
      _
    $region51: #{fcnet_forward.1} parent=1 // pred_check_branch
      %1941 = sbr.rel (0) target = $region53
    $region52: #{fcnet_forward.1} parent=1 // pred_region
      _
    $region53: #{fcnet_forward.1} parent=1 // pred_fallthru
      _
    // Predicated region
    $region54: #{fcnet_forward.1} parent=1 // pred_check
      _
    $region55: #{fcnet_forward.1} parent=1 // pred_check_branch
      %1943 = sbr.rel (0) target = $region57
    $region56: #{fcnet_forward.1} parent=1 // pred_region
      _
    $region57: #{fcnet_forward.1} parent=1 // pred_fallthru
      _
    // Predicated region
    $region58: #{fcnet_forward.1} parent=1 // pred_check
      _
    $region59: #{fcnet_forward.1} parent=1 // pred_check_branch
      %1945 = sbr.rel (0) target = $region61
    $region60: #{fcnet_forward.1} parent=1 // pred_region
      _
    $region61: #{fcnet_forward.1} parent=1 // pred_fallthru
      _
    %1946 = vsyncpa [#allocation4], 1

</llo_original>
